<compile_context>
chip_gen: v7x
topology: tpu7x:2x2x1
jax: 0.10.0
libtpu: 0.0.40
codegen_flags: <defaults>
</compile_context>

<pallas_src>
import functools

import jax
import jax.numpy as jnp
from jax import lax
from jax.experimental import pallas as pl
from jax.experimental.pallas import tpu as pltpu


def _conv_bn_relu_kernel(x_ref, w_ref, bias_ref, o_ref, *, k, dilation, th):
    """Fused dilated k x k conv + (folded BN) bias + ReLU for one row strip.

    x_ref:    (Hp, Wp, Cin)    full padded image of this batch element (bf16)
    w_ref:    (k, k, Cin, Cout) BN-folded conv weights, HWIO (bf16)
    bias_ref: (1, Cout)         fused bias (f32)
    o_ref:    (TH, Wo, Cout)    output row strip (f32)
    """
    wo = o_ref.shape[1]
    cout = o_ref.shape[2]

    strip = pl.program_id(1)
    row0 = pl.multiple_of(strip * th, th)

    acc = jnp.zeros((th, wo, cout), jnp.float32)
    # Unrolled over the small static kernel taps; each tap is a matmul over
    # the channel dim: (TH, Wo, Cin) @ (Cin, Cout) -> (TH, Wo, Cout).
    for kh in range(k):
        for kw in range(k):
            patch = x_ref[pl.ds(row0 + kh * dilation, th),
                          pl.ds(kw * dilation, wo), :]
            acc = acc + jnp.dot(patch, w_ref[kh, kw],
                                preferred_element_type=jnp.float32)

    y = acc + bias_ref[...]                      # (1, Cout) broadcast
    o_ref[...] = jnp.maximum(y, 0.0).astype(o_ref.dtype)


def _pick_row_tile(ho, wo, cout, *, max_rows=128, max_bytes=2 << 20):
    """Largest divisor of Ho giving an output strip <= max_bytes (f32)."""
    best = 1
    for d in range(1, ho + 1):
        if ho % d:
            continue
        if d <= max_rows and d * wo * cout * 4 <= max_bytes:
            best = d
    return best


def bias_convolution_forward(x_nchw, w_oihw, conv_bias, gamma, beta,
                             running_mean, running_var, *,
                             kernel_size, dilation=1, direction='', eps=1e-5,
                             row_tile=None, compute_dtype=jnp.bfloat16):
    """Forward pass equivalent to the PyTorch bias_convolution module."""
    k = kernel_size
    p = (k - 1) * dilation

    # NCHW -> NHWC (kernel layout).
    x = jnp.transpose(x_nchw, (0, 2, 3, 1)).astype(jnp.float32)

    # Directional reflection padding (glue).  ReflectionPad2d((l, r, t, b)).
    pad_map = {
        'LU': ((0, 0), (p, 0), (p, 0), (0, 0)),   # top=p, left=p
        'RU': ((0, 0), (p, 0), (0, p), (0, 0)),   # top=p, right=p
        'LD': ((0, 0), (0, p), (p, 0), (0, 0)),   # bottom=p, left=p
        'RD': ((0, 0), (0, p), (0, p), (0, 0)),   # bottom=p, right=p
    }
    if direction in pad_map:
        if p >= x.shape[1] or p >= x.shape[2]:
            raise ValueError(
                f"reflection pad {p} must be smaller than the spatial dims "
                f"{x.shape[1:3]} (same constraint as PyTorch ReflectionPad2d)")
        x = jnp.pad(x, pad_map[direction], mode='reflect')
    # else: no padding (default branch of the PyTorch module)

    n, hp, wp, cin = x.shape
    cout = w_oihw.shape[0]
    ho = hp - (k - 1) * dilation
    wo = wp - (k - 1) * dilation

    # Parameter prep (glue): OIHW -> HWIO, fold BN scale into weights & bias.
    scale = (gamma / jnp.sqrt(running_var + eps)).astype(jnp.float32)
    w_hwio = jnp.transpose(w_oihw, (2, 3, 1, 0)).astype(jnp.float32) * scale
    fused_bias = ((conv_bias - running_mean) * scale + beta)
    fused_bias = fused_bias.astype(jnp.float32).reshape(1, cout)

    # bf16 compute inputs (f32 accumulation inside the kernel).
    x = x.astype(compute_dtype)
    w_hwio = w_hwio.astype(compute_dtype)

    # Output row-strip size.
    th = row_tile if row_tile is not None else _pick_row_tile(ho, wo, cout)
    if th <= 0 or ho % th != 0:
        th = ho
    n_strips = ho // th

    kernel = functools.partial(_conv_bn_relu_kernel,
                               k=k, dilation=dilation, th=th)

    itemsize = jnp.dtype(compute_dtype).itemsize
    cost = pl.CostEstimate(
        flops=2 * n * ho * wo * k * k * cin * cout,
        transcendentals=0,
        bytes_accessed=(n * hp * wp * cin * itemsize
                        + k * k * cin * cout * itemsize
                        + cout * 4
                        + n * ho * wo * cout * 4))

    out_nhwc = pl.pallas_call(
        kernel,
        out_shape=jax.ShapeDtypeStruct((n, ho, wo, cout), jnp.float32),
        grid_spec=pltpu.PrefetchScalarGridSpec(
            num_scalar_prefetch=0,
            grid=(n, n_strips),
            in_specs=[
                # Full padded image per batch element; constant across strips
                # => DMA'd once per image, resident while its strips run.
                pl.BlockSpec((None, hp, wp, cin), lambda b, s: (b, 0, 0, 0)),
                # Weights / bias resident across the whole grid.
                pl.BlockSpec((k, k, cin, cout), lambda b, s: (0, 0, 0, 0)),
                pl.BlockSpec((1, cout), lambda b, s: (0, 0)),
            ],
            out_specs=pl.BlockSpec((None, th, wo, cout),
                                   lambda b, s: (b, s, 0, 0)),
        ),
        compiler_params=pltpu.CompilerParams(
            dimension_semantics=("parallel", "parallel"),
            vmem_limit_bytes=48 * 1024 * 1024),
        cost_estimate=cost,
    )(x, w_hwio, fused_bias)

    # NHWC -> NCHW (PyTorch convention).
    return jnp.transpose(out_nhwc, (0, 3, 1, 2))


def _reference_forward(x_nchw, w_oihw, conv_bias, gamma, beta,
                       running_mean, running_var, *,
                       kernel_size, dilation, direction, eps=1e-5):
    """Pure-JAX reference (lax.conv) for correctness checking (f32)."""
    k = kernel_size
    p = (k - 1) * dilation
    x = jnp.transpose(x_nchw, (0, 2, 3, 1)).astype(jnp.float32)
    pad_map = {
        'LU': ((0, 0), (p, 0), (p, 0), (0, 0)),
        'RU': ((0, 0), (p, 0), (0, p), (0, 0)),
        'LD': ((0, 0), (0, p), (p, 0), (0, 0)),
        'RD': ((0, 0), (0, p), (0, p), (0, 0)),
    }
    if direction in pad_map:
        x = jnp.pad(x, pad_map[direction], mode='reflect')
    w_hwio = jnp.transpose(w_oihw, (2, 3, 1, 0)).astype(jnp.float32)
    y = lax.conv_general_dilated(
        x, w_hwio, window_strides=(1, 1), padding='VALID',
        rhs_dilation=(dilation, dilation),
        dimension_numbers=('NHWC', 'HWIO', 'NHWC')) + conv_bias
    y = (y - running_mean) / jnp.sqrt(running_var + eps) * gamma + beta
    y = jnp.maximum(y, 0.0)
    return jnp.transpose(y, (0, 3, 1, 2))


if __name__ == "__main__":
    # Small, deterministic configuration.
    batch, ch_in, ch_out, H, W = 2, 4, 8, 16, 16
    kernel_size = 3

    key = jax.random.PRNGKey(0)
    kx, kw, kb, kg, kbt, km, kv = jax.random.split(key, 7)

    x = jax.random.normal(kx, (batch, ch_in, H, W), jnp.float32)
    w = jax.random.normal(kw, (ch_out, ch_in, kernel_size, kernel_size),
                          jnp.float32) * 0.1
    conv_bias = jax.random.normal(kb, (ch_out,), jnp.float32) * 0.1
    gamma = 1.0 + 0.1 * jax.random.normal(kg, (ch_out,), jnp.float32)
    beta = 0.1 * jax.random.normal(kbt, (ch_out,), jnp.float32)
    running_mean = 0.1 * jax.random.normal(km, (ch_out,), jnp.float32)
    running_var = 1.0 + 0.1 * jnp.abs(jax.random.normal(kv, (ch_out,),
                                                        jnp.float32))

    configs = [
        dict(dilation=1, direction='LU'),   # Ho=Wo=16, 2 row strips of 8
        dict(dilation=2, direction='RD'),   # dilated path, Ho=Wo=16
    ]

    for cfg in configs:
        out = bias_convolution_forward(
            x, w, conv_bias, gamma, beta, running_mean, running_var,
            kernel_size=kernel_size, dilation=cfg['dilation'],
            direction=cfg['direction'], row_tile=8)
        out = jax.block_until_ready(out)

        ref = _reference_forward(
            x, w, conv_bias, gamma, beta, running_mean, running_var,
            kernel_size=kernel_size, dilation=cfg['dilation'],
            direction=cfg['direction'])
        ref = jax.block_until_ready(ref)

        assert out.shape == ref.shape == (batch, ch_out, H, W), (out.shape,
                                                                 ref.shape)
        # bf16 inputs with f32 accumulation -> loosened tolerance vs f32 ref.
        assert jnp.allclose(out, ref, atol=5e-2, rtol=5e-2), (
            cfg, float(jnp.max(jnp.abs(out - ref))))

    print("KERNEL_OK")
</pallas_src>

<mosaic_0001>
module attributes {stable_mosaic.version = 11 : i64} {
  func.func @_conv_bn_relu_kernel(%arg0: i32, %arg1: i32, %arg2: memref<1x18x18x4xbf16, #tpu.memory_space<vmem>>, %arg3: memref<3x3x4x8xbf16, #tpu.memory_space<vmem>>, %arg4: memref<1x8xf32, #tpu.memory_space<vmem>>, %arg5: memref<1x8x16x8xf32, #tpu.memory_space<vmem>>) attributes {dimension_semantics = [#tpu.dimension_semantics<parallel>, #tpu.dimension_semantics<parallel>], iteration_bounds = array<i64: 2, 2>, scalar_prefetch = 0 : i64, scratch_operands = 0 : i64, tpu.core_type = #tpu.core_type<tc>, window_params = [{transform_indices = @transform_0, window_bounds = array<i64: 1, 18, 18, 4>}, {pipeline_mode = #tpu.pipeline_mode<synchronous>, transform_indices = @transform_1, window_bounds = array<i64: 3, 3, 4, 8>}, {pipeline_mode = #tpu.pipeline_mode<synchronous>, transform_indices = @transform_2, window_bounds = array<i64: 1, 8>}, {transform_indices = @transform_3, window_bounds = array<i64: 1, 8, 16, 8>}]} {
    %c8_i32 = arith.constant 8 : i32
    %0 = arith.muli %arg1, %c8_i32 : i32
    %1 = tpu.assume_multiple %0, 8 : i32
    %cst = arith.constant 0.000000e+00 : f32
    %2 = vector.broadcast %cst : f32 to vector<8x16x8xf32>
    %c0_i32 = arith.constant 0 : i32
    %3 = arith.addi %1, %c0_i32 : i32
    %c0 = arith.constant 0 : index
    %4 = arith.index_cast %3 : i32 to index
    %c0_0 = arith.constant 0 : index
    %c0_1 = arith.constant 0 : index
    %5 = vector.load %arg2[%c0, %4, %c0_0, %c0_1] : memref<1x18x18x4xbf16, #tpu.memory_space<vmem>>, vector<1x8x16x4xbf16>
    %6 = vector.shape_cast %5 : vector<1x8x16x4xbf16> to vector<8x16x4xbf16>
    %c0_2 = arith.constant 0 : index
    %c0_3 = arith.constant 0 : index
    %c0_4 = arith.constant 0 : index
    %c0_5 = arith.constant 0 : index
    %7 = vector.load %arg3[%c0_2, %c0_3, %c0_4, %c0_5] : memref<3x3x4x8xbf16, #tpu.memory_space<vmem>>, vector<1x1x4x8xbf16>
    %8 = vector.shape_cast %7 : vector<1x1x4x8xbf16> to vector<4x8xbf16>
    %cst_6 = arith.constant dense<0.000000e+00> : vector<8x16x8xf32>
    %9 = tpu.matmul %6, %8, %cst_6 {dimension_numbers = #tpu.dot_dimension_numbers<[2], [0], [0, 1], [1], [0, 0, 0, 1, 1, 1], [], []>} : vector<8x16x4xbf16>, vector<4x8xbf16>, vector<8x16x8xf32> -> vector<8x16x8xf32>
    %10 = arith.addf %2, %9 : vector<8x16x8xf32>
    %c0_i32_7 = arith.constant 0 : i32
    %11 = arith.addi %1, %c0_i32_7 : i32
    %c0_8 = arith.constant 0 : index
    %12 = arith.index_cast %11 : i32 to index
    %c1 = arith.constant 1 : index
    %c0_9 = arith.constant 0 : index
    %13 = vector.load %arg2[%c0_8, %12, %c1, %c0_9] : memref<1x18x18x4xbf16, #tpu.memory_space<vmem>>, vector<1x8x16x4xbf16>
    %14 = vector.shape_cast %13 : vector<1x8x16x4xbf16> to vector<8x16x4xbf16>
    %c0_10 = arith.constant 0 : index
    %c1_11 = arith.constant 1 : index
    %c0_12 = arith.constant 0 : index
    %c0_13 = arith.constant 0 : index
    %15 = vector.load %arg3[%c0_10, %c1_11, %c0_12, %c0_13] : memref<3x3x4x8xbf16, #tpu.memory_space<vmem>>, vector<1x1x4x8xbf16>
    %16 = vector.shape_cast %15 : vector<1x1x4x8xbf16> to vector<4x8xbf16>
    %cst_14 = arith.constant dense<0.000000e+00> : vector<8x16x8xf32>
    %17 = tpu.matmul %14, %16, %cst_14 {dimension_numbers = #tpu.dot_dimension_numbers<[2], [0], [0, 1], [1], [0, 0, 0, 1, 1, 1], [], []>} : vector<8x16x4xbf16>, vector<4x8xbf16>, vector<8x16x8xf32> -> vector<8x16x8xf32>
    %18 = arith.addf %10, %17 : vector<8x16x8xf32>
    %c0_i32_15 = arith.constant 0 : i32
    %19 = arith.addi %1, %c0_i32_15 : i32
    %c0_16 = arith.constant 0 : index
    %20 = arith.index_cast %19 : i32 to index
    %c2 = arith.constant 2 : index
    %c0_17 = arith.constant 0 : index
    %21 = vector.load %arg2[%c0_16, %20, %c2, %c0_17] : memref<1x18x18x4xbf16, #tpu.memory_space<vmem>>, vector<1x8x16x4xbf16>
    %22 = vector.shape_cast %21 : vector<1x8x16x4xbf16> to vector<8x16x4xbf16>
    %c0_18 = arith.constant 0 : index
    %c2_19 = arith.constant 2 : index
    %c0_20 = arith.constant 0 : index
    %c0_21 = arith.constant 0 : index
    %23 = vector.load %arg3[%c0_18, %c2_19, %c0_20, %c0_21] : memref<3x3x4x8xbf16, #tpu.memory_space<vmem>>, vector<1x1x4x8xbf16>
    %24 = vector.shape_cast %23 : vector<1x1x4x8xbf16> to vector<4x8xbf16>
    %cst_22 = arith.constant dense<0.000000e+00> : vector<8x16x8xf32>
    %25 = tpu.matmul %22, %24, %cst_22 {dimension_numbers = #tpu.dot_dimension_numbers<[2], [0], [0, 1], [1], [0, 0, 0, 1, 1, 1], [], []>} : vector<8x16x4xbf16>, vector<4x8xbf16>, vector<8x16x8xf32> -> vector<8x16x8xf32>
    %26 = arith.addf %18, %25 : vector<8x16x8xf32>
    %c1_i32 = arith.constant 1 : i32
    %27 = arith.addi %1, %c1_i32 : i32
    %c0_23 = arith.constant 0 : index
    %28 = arith.index_cast %27 : i32 to index
    %c0_24 = arith.constant 0 : index
    %c0_25 = arith.constant 0 : index
    %29 = vector.load %arg2[%c0_23, %28, %c0_24, %c0_25] : memref<1x18x18x4xbf16, #tpu.memory_space<vmem>>, vector<1x8x16x4xbf16>
    %30 = vector.shape_cast %29 : vector<1x8x16x4xbf16> to vector<8x16x4xbf16>
    %c1_26 = arith.constant 1 : index
    %c0_27 = arith.constant 0 : index
    %c0_28 = arith.constant 0 : index
    %c0_29 = arith.constant 0 : index
    %31 = vector.load %arg3[%c1_26, %c0_27, %c0_28, %c0_29] : memref<3x3x4x8xbf16, #tpu.memory_space<vmem>>, vector<1x1x4x8xbf16>
    %32 = vector.shape_cast %31 : vector<1x1x4x8xbf16> to vector<4x8xbf16>
    %cst_30 = arith.constant dense<0.000000e+00> : vector<8x16x8xf32>
    %33 = tpu.matmul %30, %32, %cst_30 {dimension_numbers = #tpu.dot_dimension_numbers<[2], [0], [0, 1], [1], [0, 0, 0, 1, 1, 1], [], []>} : vector<8x16x4xbf16>, vector<4x8xbf16>, vector<8x16x8xf32> -> vector<8x16x8xf32>
    %34 = arith.addf %26, %33 : vector<8x16x8xf32>
    %c1_i32_31 = arith.constant 1 : i32
    %35 = arith.addi %1, %c1_i32_31 : i32
    %c0_32 = arith.constant 0 : index
    %36 = arith.index_cast %35 : i32 to index
    %c1_33 = arith.constant 1 : index
    %c0_34 = arith.constant 0 : index
    %37 = vector.load %arg2[%c0_32, %36, %c1_33, %c0_34] : memref<1x18x18x4xbf16, #tpu.memory_space<vmem>>, vector<1x8x16x4xbf16>
    %38 = vector.shape_cast %37 : vector<1x8x16x4xbf16> to vector<8x16x4xbf16>
    %c1_35 = arith.constant 1 : index
    %c1_36 = arith.constant 1 : index
    %c0_37 = arith.constant 0 : index
    %c0_38 = arith.constant 0 : index
    %39 = vector.load %arg3[%c1_35, %c1_36, %c0_37, %c0_38] : memref<3x3x4x8xbf16, #tpu.memory_space<vmem>>, vector<1x1x4x8xbf16>
    %40 = vector.shape_cast %39 : vector<1x1x4x8xbf16> to vector<4x8xbf16>
    %cst_39 = arith.constant dense<0.000000e+00> : vector<8x16x8xf32>
    %41 = tpu.matmul %38, %40, %cst_39 {dimension_numbers = #tpu.dot_dimension_numbers<[2], [0], [0, 1], [1], [0, 0, 0, 1, 1, 1], [], []>} : vector<8x16x4xbf16>, vector<4x8xbf16>, vector<8x16x8xf32> -> vector<8x16x8xf32>
    %42 = arith.addf %34, %41 : vector<8x16x8xf32>
    %c1_i32_40 = arith.constant 1 : i32
    %43 = arith.addi %1, %c1_i32_40 : i32
    %c0_41 = arith.constant 0 : index
    %44 = arith.index_cast %43 : i32 to index
    %c2_42 = arith.constant 2 : index
    %c0_43 = arith.constant 0 : index
    %45 = vector.load %arg2[%c0_41, %44, %c2_42, %c0_43] : memref<1x18x18x4xbf16, #tpu.memory_space<vmem>>, vector<1x8x16x4xbf16>
    %46 = vector.shape_cast %45 : vector<1x8x16x4xbf16> to vector<8x16x4xbf16>
    %c1_44 = arith.constant 1 : index
    %c2_45 = arith.constant 2 : index
    %c0_46 = arith.constant 0 : index
    %c0_47 = arith.constant 0 : index
    %47 = vector.load %arg3[%c1_44, %c2_45, %c0_46, %c0_47] : memref<3x3x4x8xbf16, #tpu.memory_space<vmem>>, vector<1x1x4x8xbf16>
    %48 = vector.shape_cast %47 : vector<1x1x4x8xbf16> to vector<4x8xbf16>
    %cst_48 = arith.constant dense<0.000000e+00> : vector<8x16x8xf32>
    %49 = tpu.matmul %46, %48, %cst_48 {dimension_numbers = #tpu.dot_dimension_numbers<[2], [0], [0, 1], [1], [0, 0, 0, 1, 1, 1], [], []>} : vector<8x16x4xbf16>, vector<4x8xbf16>, vector<8x16x8xf32> -> vector<8x16x8xf32>
    %50 = arith.addf %42, %49 : vector<8x16x8xf32>
    %c2_i32 = arith.constant 2 : i32
    %51 = arith.addi %1, %c2_i32 : i32
    %c0_49 = arith.constant 0 : index
    %52 = arith.index_cast %51 : i32 to index
    %c0_50 = arith.constant 0 : index
    %c0_51 = arith.constant 0 : index
    %53 = vector.load %arg2[%c0_49, %52, %c0_50, %c0_51] : memref<1x18x18x4xbf16, #tpu.memory_space<vmem>>, vector<1x8x16x4xbf16>
    %54 = vector.shape_cast %53 : vector<1x8x16x4xbf16> to vector<8x16x4xbf16>
    %c2_52 = arith.constant 2 : index
    %c0_53 = arith.constant 0 : index
    %c0_54 = arith.constant 0 : index
    %c0_55 = arith.constant 0 : index
    %55 = vector.load %arg3[%c2_52, %c0_53, %c0_54, %c0_55] : memref<3x3x4x8xbf16, #tpu.memory_space<vmem>>, vector<1x1x4x8xbf16>
    %56 = vector.shape_cast %55 : vector<1x1x4x8xbf16> to vector<4x8xbf16>
    %cst_56 = arith.constant dense<0.000000e+00> : vector<8x16x8xf32>
    %57 = tpu.matmul %54, %56, %cst_56 {dimension_numbers = #tpu.dot_dimension_numbers<[2], [0], [0, 1], [1], [0, 0, 0, 1, 1, 1], [], []>} : vector<8x16x4xbf16>, vector<4x8xbf16>, vector<8x16x8xf32> -> vector<8x16x8xf32>
    %58 = arith.addf %50, %57 : vector<8x16x8xf32>
    %c2_i32_57 = arith.constant 2 : i32
    %59 = arith.addi %1, %c2_i32_57 : i32
    %c0_58 = arith.constant 0 : index
    %60 = arith.index_cast %59 : i32 to index
    %c1_59 = arith.constant 1 : index
    %c0_60 = arith.constant 0 : index
    %61 = vector.load %arg2[%c0_58, %60, %c1_59, %c0_60] : memref<1x18x18x4xbf16, #tpu.memory_space<vmem>>, vector<1x8x16x4xbf16>
    %62 = vector.shape_cast %61 : vector<1x8x16x4xbf16> to vector<8x16x4xbf16>
    %c2_61 = arith.constant 2 : index
    %c1_62 = arith.constant 1 : index
    %c0_63 = arith.constant 0 : index
    %c0_64 = arith.constant 0 : index
    %63 = vector.load %arg3[%c2_61, %c1_62, %c0_63, %c0_64] : memref<3x3x4x8xbf16, #tpu.memory_space<vmem>>, vector<1x1x4x8xbf16>
    %64 = vector.shape_cast %63 : vector<1x1x4x8xbf16> to vector<4x8xbf16>
    %cst_65 = arith.constant dense<0.000000e+00> : vector<8x16x8xf32>
    %65 = tpu.matmul %62, %64, %cst_65 {dimension_numbers = #tpu.dot_dimension_numbers<[2], [0], [0, 1], [1], [0, 0, 0, 1, 1, 1], [], []>} : vector<8x16x4xbf16>, vector<4x8xbf16>, vector<8x16x8xf32> -> vector<8x16x8xf32>
    %66 = arith.addf %58, %65 : vector<8x16x8xf32>
    %c2_i32_66 = arith.constant 2 : i32
    %67 = arith.addi %1, %c2_i32_66 : i32
    %c0_67 = arith.constant 0 : index
    %68 = arith.index_cast %67 : i32 to index
    %c2_68 = arith.constant 2 : index
    %c0_69 = arith.constant 0 : index
    %69 = vector.load %arg2[%c0_67, %68, %c2_68, %c0_69] : memref<1x18x18x4xbf16, #tpu.memory_space<vmem>>, vector<1x8x16x4xbf16>
    %70 = vector.shape_cast %69 : vector<1x8x16x4xbf16> to vector<8x16x4xbf16>
    %c2_70 = arith.constant 2 : index
    %c2_71 = arith.constant 2 : index
    %c0_72 = arith.constant 0 : index
    %c0_73 = arith.constant 0 : index
    %71 = vector.load %arg3[%c2_70, %c2_71, %c0_72, %c0_73] : memref<3x3x4x8xbf16, #tpu.memory_space<vmem>>, vector<1x1x4x8xbf16>
    %72 = vector.shape_cast %71 : vector<1x1x4x8xbf16> to vector<4x8xbf16>
    %cst_74 = arith.constant dense<0.000000e+00> : vector<8x16x8xf32>
    %73 = tpu.matmul %70, %72, %cst_74 {dimension_numbers = #tpu.dot_dimension_numbers<[2], [0], [0, 1], [1], [0, 0, 0, 1, 1, 1], [], []>} : vector<8x16x4xbf16>, vector<4x8xbf16>, vector<8x16x8xf32> -> vector<8x16x8xf32>
    %74 = arith.addf %66, %73 : vector<8x16x8xf32>
    %c0_75 = arith.constant 0 : index
    %c0_76 = arith.constant 0 : index
    %75 = vector.load %arg4[%c0_75, %c0_76] : memref<1x8xf32, #tpu.memory_space<vmem>>, vector<1x8xf32>
    %76 = vector.shape_cast %75 : vector<1x8xf32> to vector<1x1x8xf32>
    %77 = vector.broadcast %76 : vector<1x1x8xf32> to vector<8x16x8xf32>
    %78 = arith.addf %74, %77 : vector<8x16x8xf32>
    %cst_77 = arith.constant 0.000000e+00 : f32
    %79 = vector.broadcast %cst_77 : f32 to vector<8x16x8xf32>
    %80 = arith.maximumf %78, %79 : vector<8x16x8xf32>
    %c0_78 = arith.constant 0 : index
    %c0_79 = arith.constant 0 : index
    %c0_80 = arith.constant 0 : index
    %c0_81 = arith.constant 0 : index
    %81 = vector.load %arg5[%c0_78, %c0_79, %c0_80, %c0_81] : memref<1x8x16x8xf32, #tpu.memory_space<vmem>>, vector<1x8x16x8xf32>
    %82 = vector.shape_cast %81 : vector<1x8x16x8xf32> to vector<8x16x8xf32>
    %83 = vector.shape_cast %80 : vector<8x16x8xf32> to vector<1x8x16x8xf32>
    tpu.vector_store %arg5[%c0_78, %c0_79, %c0_80, %c0_81], %83 {strides = array<i32>} : memref<1x8x16x8xf32, #tpu.memory_space<vmem>>, vector<1x8x16x8xf32>,
    return
  }
  func.func @transform_0(%arg0: i32, %arg1: i32) -> (i32, i32, i32, i32) {
    %c0_i32 = arith.constant 0 : i32
    %c0_i32_0 = arith.constant 0 : i32
    %c0_i32_1 = arith.constant 0 : i32
    %c0_i32_2 = arith.constant 0 : i32
    return %arg0, %c0_i32, %c0_i32_0, %c0_i32_1 : i32, i32, i32, i32
  }
  func.func @transform_1(%arg0: i32, %arg1: i32) -> (i32, i32, i32, i32) {
    %c0_i32 = arith.constant 0 : i32
    %c0_i32_0 = arith.constant 0 : i32
    %c0_i32_1 = arith.constant 0 : i32
    %c0_i32_2 = arith.constant 0 : i32
    %c0_i32_3 = arith.constant 0 : i32
    return %c0_i32, %c0_i32_0, %c0_i32_1, %c0_i32_2 : i32, i32, i32, i32
  }
  func.func @transform_2(%arg0: i32, %arg1: i32) -> (i32, i32) {
    %c0_i32 = arith.constant 0 : i32
    %c0_i32_0 = arith.constant 0 : i32
    %c0_i32_1 = arith.constant 0 : i32
    return %c0_i32, %c0_i32_0 : i32, i32
  }
  func.func @transform_3(%arg0: i32, %arg1: i32) -> (i32, i32, i32, i32) {
    %c0_i32 = arith.constant 0 : i32
    %c0_i32_0 = arith.constant 0 : i32
    %c0_i32_1 = arith.constant 0 : i32
    return %arg0, %arg1, %c0_i32, %c0_i32_0 : i32, i32, i32, i32
  }
}

</mosaic_0001>

<llo_original>
// kernel: tpu_custom_call.1
$region0: #{tpu_custom_call.1}
  #allocation0 [shape = 'u32[]', space=smem, size = 0x4, offset = 0x4, fixed_abs, tag = 'smem constant byte address 0x4 - core index']
  #allocation1 [shape = 'u32[144,128]{1,0:T(1,128)}', space=vmem, size = 0x12000, scoped, tag = 'internal scratch']
  %s0 = inlined_call_operand.vmem [shape: bf16[2,18,18,4], index: 0, kind: input, shape index: {}]
  %s1 = inlined_call_operand.vmem [shape: bf16[3,3,4,8], index: 1, kind: input, shape index: {}]
  %s2 = inlined_call_operand.vmem [shape: f32[1,8], index: 2, kind: input, shape index: {}]
  %s3 = inlined_call_operand.vmem [shape: f32[2,16,16,8], index: 3, kind: output, shape index: {}]
  %s4 = sld [smem:[#allocation0]]
  $region45: #{tpu_custom_call.1} parent=0
    _
  %s6 = ssub.s32 1, %s4
  %s7 = scalar_select 0, %s6, %s4
  loop: start=0, step=1, limit=6
  $region2: #{tpu_custom_call.1} parent=0 // loop_pre_header
    _
  $region3: #{tpu_custom_call.1} parent=0 // loop_header
    %s9 = sphi 0, %s13
    %p10 = scmp.ge.s32.totalorder %s9, 6
    %s16 = sphi 0, %s28
    %s17 = sphi 0, %s24
    %s18 = sphi 0, %s16
    %s19 = sphi 0, %s17
    %s20 = sphi 0, %s18
    %s21 = sphi 0, %s19
    %s31 = sphi 0, %s33
    %s34 = sphi 0, %s31
    %s35 = sphi 0, %s34
    %s51 = sphi 0, %s35
    %s55 = sphi 0, %s55
    %s57 = sphi 0, %s55
    %s58 = sphi 0, %s57
    %s72 = sphi 0, %s58
    %s76 = sphi 0, %s76
    %s78 = sphi 0, %s76
    %s79 = sphi 0, %s78
    %s93 = sphi 0, %s79
    %s101 = sphi 0, %s103
    %s104 = sphi 0, %s101
    %s105 = sphi 0, %s104
    %s121 = sphi 0, %s105
  $region4: #{tpu_custom_call.1} parent=0 // loop_header_branch
    %12 = sbr.rel (%p10) target = $region8
  $region5: #{tpu_custom_call.1} parent=0 // loop_body
    %s14 = ssub.s32 %s9, 1
    %s15 = ssub.s32 %s9, 2
    %s22 = sadd.s32 1, %s17
    %p23 = scmp.ge.s32.totalorder %s22, 2
    %s24 = scalar_select %p23, 0, %s22
    %s25 = sadd.s32 1, %s16
    %s26 = scalar_select %p23, %s25, %s16
    %p27 = scmp.ge.s32.totalorder %s26, 2
    %s28 = scalar_select %p27, 0, %s26
    %s29 = ssub.s32 %s16, %s28
    %p30 = scmp.eq.s32.totalorder %s29, 0
    %s32 = sadd.s32 %s31, 1
    %s33 = scalar_select %p30, %s31, %s32
    %p36 = pneg %p30
    %p37 = scmp.eq.s32.totalorder %s9, 3
    %p38 = por %p36, %p37
    %p39 = scmp.ne.s32.totalorder %s31, %s34
    %p40 = scmp.eq.s32.totalorder %s9, 0
    %p41 = por %p39, %p40
    %p42 = scmp.ne.s32.totalorder %s31, %s34
    %p43 = scmp.eq.s32.totalorder %s14, 3
    %p44 = por %p42, %p43
    %p45 = scmp.ne.s32.totalorder %s34, %s35
    %p46 = scmp.eq.s32.totalorder %s14, 0
    %p47 = por %p45, %p46
    %p48 = scmp.ne.s32.totalorder %s34, %s35
    %p49 = scmp.eq.s32.totalorder %s15, 3
    %p50 = por %p48, %p49
    %p52 = scmp.ne.s32.totalorder %s35, %s51
    %p53 = scmp.eq.s32.totalorder %s15, 0
    %p54 = por %p52, %p53
    %s56 = sadd.s32 %s55, 1
    %p59 = scmp.eq.s32.totalorder %s9, 3
    %p60 = scmp.ne.s32.totalorder %s55, %s57
    %p61 = scmp.eq.s32.totalorder %s9, 0
    %p62 = por %p60, %p61
    %p63 = scmp.ne.s32.totalorder %s55, %s57
    %p64 = scmp.eq.s32.totalorder %s14, 3
    %p65 = por %p63, %p64
    %p66 = scmp.ne.s32.totalorder %s57, %s58
    %p67 = scmp.eq.s32.totalorder %s14, 0
    %p68 = por %p66, %p67
    %p69 = scmp.ne.s32.totalorder %s57, %s58
    %p70 = scmp.eq.s32.totalorder %s15, 3
    %p71 = por %p69, %p70
    %p73 = scmp.ne.s32.totalorder %s58, %s72
    %p74 = scmp.eq.s32.totalorder %s15, 0
    %p75 = por %p73, %p74
    %s77 = sadd.s32 %s76, 1
    %p80 = scmp.eq.s32.totalorder %s9, 3
    %p81 = scmp.ne.s32.totalorder %s76, %s78
    %p82 = scmp.eq.s32.totalorder %s9, 0
    %p83 = por %p81, %p82
    %p84 = scmp.ne.s32.totalorder %s76, %s78
    %p85 = scmp.eq.s32.totalorder %s14, 3
    %p86 = por %p84, %p85
    %p87 = scmp.ne.s32.totalorder %s78, %s79
    %p88 = scmp.eq.s32.totalorder %s14, 0
    %p89 = por %p87, %p88
    %p90 = scmp.ne.s32.totalorder %s78, %s79
    %p91 = scmp.eq.s32.totalorder %s15, 3
    %p92 = por %p90, %p91
    %p94 = scmp.ne.s32.totalorder %s79, %s93
    %p95 = scmp.eq.s32.totalorder %s15, 0
    %p96 = por %p94, %p95
    %s97 = ssub.s32 %s16, %s28
    %s98 = ssub.s32 %s17, %s24
    %s99 = sor.u32 %s97, %s98
    %p100 = scmp.eq.s32.totalorder %s99, 0
    %s102 = sadd.s32 %s101, 1
    %s103 = scalar_select %p100, %s101, %s102
    %p106 = pneg %p100
    %p107 = scmp.eq.s32.totalorder %s9, 3
    %p108 = por %p106, %p107
    %p109 = scmp.ne.s32.totalorder %s101, %s104
    %p110 = scmp.eq.s32.totalorder %s9, 0
    %p111 = por %p109, %p110
    %p112 = scmp.ne.s32.totalorder %s101, %s104
    %p113 = scmp.eq.s32.totalorder %s14, 3
    %p114 = por %p112, %p113
    %p115 = scmp.ne.s32.totalorder %s104, %s105
    %p116 = scmp.eq.s32.totalorder %s14, 0
    %p117 = por %p115, %p116
    %p118 = scmp.ne.s32.totalorder %s104, %s105
    %p119 = scmp.eq.s32.totalorder %s15, 3
    %p120 = por %p118, %p119
    %p122 = scmp.ne.s32.totalorder %s105, %s121
    %p123 = scmp.eq.s32.totalorder %s15, 0
    %p124 = por %p122, %p123
    %p125 = scmp.le.s32.totalorder 1, %s9
    %p126 = scmp.lt.s32.totalorder %s9, 5
    %p127 = pnand %p125, %p126
    %p128 = pneg %p127
    // Predicated region
    $region9: #{tpu_custom_call.1} parent=5 // pred_check
      _
    $region10: #{tpu_custom_call.1} parent=5 // pred_check_branch
      %130 = sbr.rel (%p127) target = $region12
    $region11: #{tpu_custom_call.1} parent=5 // pred_region
      %s131 = ssub.s32 %s9, 1
      // Predicated region
      $region13: #{tpu_custom_call.1} parent=11 // pred_check
        %p132 = pneg %p68
      $region14: #{tpu_custom_call.1} parent=11 // pred_check_branch
        %134 = sbr.rel (%p132) target = $region16
      $region15: #{tpu_custom_call.1} parent=11 // pred_region
        _
      $region16: #{tpu_custom_call.1} parent=11 // pred_fallthru
        _
      // Predicated region
      $region17: #{tpu_custom_call.1} parent=11 // pred_check
        %p135 = pneg %p89
      $region18: #{tpu_custom_call.1} parent=11 // pred_check_branch
        %137 = sbr.rel (%p135) target = $region20
      $region19: #{tpu_custom_call.1} parent=11 // pred_region
        _
      $region20: #{tpu_custom_call.1} parent=11 // pred_fallthru
        _
    $region12: #{tpu_custom_call.1} parent=5 // pred_fallthru
      _
    %p138 = scmp.lt.s32.totalorder %s9, 4
    // Predicated region
    $region21: #{tpu_custom_call.1} parent=5 // pred_check
      %p139 = pneg %p138
    $region22: #{tpu_custom_call.1} parent=5 // pred_check_branch
      %141 = sbr.rel (%p139) target = $region24
    $region23: #{tpu_custom_call.1} parent=5 // pred_region
      // Predicated region
      $region25: #{tpu_custom_call.1} parent=23 // pred_check
        %p142 = pneg %p41
      $region26: #{tpu_custom_call.1} parent=23 // pred_check_branch
        %144 = sbr.rel (%p142) target = $region28
      $region27: #{tpu_custom_call.1} parent=23 // pred_region
        %p145 = scmp.lt.s32.totalorder %s16, 1
        %s146 = scalar_select %p145, %s16, 1
        %s147 = smul.addr %s146, 54
        %s148 = smul.addr %s147, 4
        %s149 = scalar_lea.vmem %s0, %s148
      $region28: #{tpu_custom_call.1} parent=23 // pred_fallthru
        _
    $region24: #{tpu_custom_call.1} parent=5 // pred_fallthru
      _
    %p150 = scmp.le.s32.totalorder 1, %s9
    %p151 = scmp.lt.s32.totalorder %s9, 5
    %p152 = pnand %p150, %p151
    %p153 = pneg %p152
    // Predicated region
    $region29: #{tpu_custom_call.1} parent=5 // pred_check
      _
    $region30: #{tpu_custom_call.1} parent=5 // pred_check_branch
      %155 = sbr.rel (%p152) target = $region32
    $region31: #{tpu_custom_call.1} parent=5 // pred_region
      %s156 = ssub.s32 %s9, 1
      %p157 = scmp.lt.s32.totalorder %s18, 1
      %s158 = scalar_select %p157, %s18, 1
      %s159 = smul.addr %s158, 54
      %s160 = smul.addr %s159, 4
      %s161 = scalar_lea.vmem %s0, %s160
      %p162 = pneg %p47
      %p163 = pneg %p44
      %p164 = pneg %p68
      %p165 = pneg %p65
      %p166 = pneg %p89
      %p167 = pneg %p86
      %p168 = pneg %p117
      %p169 = pneg %p114
      %s170 = smul.u32 8, %s19
      %p171 = scmp.lt.s32.totalorder %s18, 1
      %s172 = scalar_select %p171, %s18, 1
      %p173 = scmp.lt.s32.totalorder %s170, 15
      %s174 = scalar_select %p173, %s170, 15
      %s175 = smul.addr %s174, 2
      %s176 = smul.addr %s172, 32
      %s177 = sadd.s32 %s175, %s176
      %s178 = smul.addr %s177, 8
      %s179 = scalar_lea.vmem %s3, %s178
      %p180 = scmp.lt.s32.totalorder %s18, 1
      %s181 = scalar_select %p180, %s18, 1
      %s182 = smul.addr %s181, 54
      %s183 = smul.addr %s182, 4
      %s184 = scalar_lea.vmem %s0, %s183
      %s185 = smul.u32 8, %s19
      %p186 = scmp.lt.s32.totalorder %s18, 1
      %s187 = scalar_select %p186, %s18, 1
      %p188 = scmp.lt.s32.totalorder %s185, 15
      %s189 = scalar_select %p188, %s185, 15
      %s190 = smul.addr %s189, 2
      %s191 = smul.addr %s187, 32
      %s192 = sadd.s32 %s190, %s191
      %s193 = smul.addr %s192, 8
      %s194 = scalar_lea.vmem %s3, %s193
      %s195 = smul.u32 8, %s19
      %s197 = smul.u32 %s19, 8
      %s198 = smul.u32 %s197, 3
      %s199 = smul.addr %s198, 4
      %s200 = scalar_lea.vmem %s184, %s199
      %v201 = vld [vmem:[%s200] sm:$0xf]
      %v202 = vld [vmem:[%s200 + $0x4] sm:$0xf]
      %v203 = vld [vmem:[%s200 + $0xc] sm:$0xf]
      %v204 = vld [vmem:[%s200 + $0x10] sm:$0xf]
      %v205 = vld [vmem:[%s200 + $0x18] sm:$0xf]
      %v206 = vld [vmem:[%s200 + $0x1c] sm:$0xf]
      %v207 = vld [vmem:[%s200 + $0x24] sm:$0xf]
      %v208 = vld [vmem:[%s200 + $0x28] sm:$0xf]
      %v209 = vld [vmem:[%s200 + $0x30] sm:$0xf]
      %v210 = vld [vmem:[%s200 + $0x34] sm:$0xf]
      %v211 = vld [vmem:[%s200 + $0x3c] sm:$0xf]
      %v212 = vld [vmem:[%s200 + $0x40] sm:$0xf]
      %v213 = vld [vmem:[%s200 + $0x48] sm:$0xf]
      %v214 = vld [vmem:[%s200 + $0x4c] sm:$0xf]
      %v215 = vld [vmem:[%s200 + $0x54] sm:$0xf]
      %v216 = vld [vmem:[%s200 + $0x58] sm:$0xf]
      %v217 = vld [vmem:[%s1] sm:$0x3]
      %v218 = vld [vmem:[%s200 + $0x8] sm:$0x1]
      %v219 = vld [vmem:[%s200 + $0x14] sm:$0x1]
      %v220 = vld [vmem:[%s200 + $0x20] sm:$0x1]
      %v221 = vld [vmem:[%s200 + $0x2c] sm:$0x1]
      %v222 = vld [vmem:[%s200 + $0x38] sm:$0x1]
      %v223 = vld [vmem:[%s200 + $0x44] sm:$0x1]
      %v224 = vld [vmem:[%s200 + $0x50] sm:$0x1]
      %v225 = vld [vmem:[%s200 + $0x5c] sm:$0x1]
      %s226 = scalar_lea.vmem %s1, 2
      %v227 = vld [vmem:[%s226] sm:$0x3]
      %vm228 = vsmask.f32 3328
      %vm229 = vsmask.f32 7440
      %vm230 = vmor %vm228, %vm229
      %v232 = vshrl.u32 %v201, 16
      %v234 = vrot.slane %v232, 4
      %v235 = vshll.u32 %v201, 16
      %v237 = vrot.slane %v235, 5
      %v238 = vor.u32 %v234, %v237
      %v239 = vrot.slane %v238, 4
      %v241 = vshll.u32 %v202, 16
      %v243 = vrot.slane %v241, 5
      %v244 = vsel %vm230, %v239, %v243
      %v245 = vshrl.u32 %v202, 16
      %v247 = vrot.slane %v245, 4
      %v248 = vor.u32 %v247, %v243
      %v249 = vrot.slane %v248, 4
      %v251 = vshll.u32 %v218, 16
      %v253 = vrot.slane %v251, 5
      %v254 = vsel %vm230, %v249, %v253
      %v256 = vshrl.u32 %v203, 16
      %v258 = vrot.slane %v256, 4
      %v259 = vshll.u32 %v203, 16
      %v261 = vrot.slane %v259, 5
      %v262 = vor.u32 %v258, %v261
      %v263 = vrot.slane %v262, 4
      %v265 = vshll.u32 %v204, 16
      %v267 = vrot.slane %v265, 5
      %v268 = vsel %vm230, %v263, %v267
      %v269 = vshrl.u32 %v204, 16
      %v271 = vrot.slane %v269, 4
      %v272 = vor.u32 %v271, %v267
      %v273 = vrot.slane %v272, 4
      %v275 = vshll.u32 %v219, 16
      %v277 = vrot.slane %v275, 5
      %v278 = vsel %vm230, %v273, %v277
      %v280 = vshrl.u32 %v205, 16
      %v282 = vrot.slane %v280, 4
      %v283 = vshll.u32 %v205, 16
      %v285 = vrot.slane %v283, 5
      %v286 = vor.u32 %v282, %v285
      %v287 = vrot.slane %v286, 4
      %v289 = vshll.u32 %v206, 16
      %v291 = vrot.slane %v289, 5
      %v292 = vsel %vm230, %v287, %v291
      %v293 = vshrl.u32 %v206, 16
      %v295 = vrot.slane %v293, 4
      %v296 = vor.u32 %v295, %v291
      %v297 = vrot.slane %v296, 4
      %v299 = vshll.u32 %v220, 16
      %v301 = vrot.slane %v299, 5
      %v302 = vsel %vm230, %v297, %v301
      %v304 = vshrl.u32 %v207, 16
      %v306 = vrot.slane %v304, 4
      %v307 = vshll.u32 %v207, 16
      %v309 = vrot.slane %v307, 5
      %v310 = vor.u32 %v306, %v309
      %v311 = vrot.slane %v310, 4
      %v313 = vshll.u32 %v208, 16
      %v315 = vrot.slane %v313, 5
      %v316 = vsel %vm230, %v311, %v315
      %v317 = vshrl.u32 %v208, 16
      %v319 = vrot.slane %v317, 4
      %v320 = vor.u32 %v319, %v315
      %v321 = vrot.slane %v320, 4
      %v323 = vshll.u32 %v221, 16
      %v325 = vrot.slane %v323, 5
      %v326 = vsel %vm230, %v321, %v325
      %v328 = vshrl.u32 %v209, 16
      %v330 = vrot.slane %v328, 4
      %v331 = vshll.u32 %v209, 16
      %v333 = vrot.slane %v331, 5
      %v334 = vor.u32 %v330, %v333
      %v335 = vrot.slane %v334, 4
      %v337 = vshll.u32 %v210, 16
      %v339 = vrot.slane %v337, 5
      %v340 = vsel %vm230, %v335, %v339
      %v341 = vshrl.u32 %v210, 16
      %v343 = vrot.slane %v341, 4
      %v344 = vor.u32 %v343, %v339
      %v345 = vrot.slane %v344, 4
      %v347 = vshll.u32 %v222, 16
      %v349 = vrot.slane %v347, 5
      %v350 = vsel %vm230, %v345, %v349
      %v352 = vshrl.u32 %v211, 16
      %v354 = vrot.slane %v352, 4
      %v355 = vshll.u32 %v211, 16
      %v357 = vrot.slane %v355, 5
      %v358 = vor.u32 %v354, %v357
      %v359 = vrot.slane %v358, 4
      %v361 = vshll.u32 %v212, 16
      %v363 = vrot.slane %v361, 5
      %v364 = vsel %vm230, %v359, %v363
      %v365 = vshrl.u32 %v212, 16
      %v367 = vrot.slane %v365, 4
      %v368 = vor.u32 %v367, %v363
      %v369 = vrot.slane %v368, 4
      %v371 = vshll.u32 %v223, 16
      %v373 = vrot.slane %v371, 5
      %v374 = vsel %vm230, %v369, %v373
      %v376 = vshrl.u32 %v213, 16
      %v378 = vrot.slane %v376, 4
      %v379 = vshll.u32 %v213, 16
      %v381 = vrot.slane %v379, 5
      %v382 = vor.u32 %v378, %v381
      %v383 = vrot.slane %v382, 4
      %v385 = vshll.u32 %v214, 16
      %v387 = vrot.slane %v385, 5
      %v388 = vsel %vm230, %v383, %v387
      %v389 = vshrl.u32 %v214, 16
      %v391 = vrot.slane %v389, 4
      %v392 = vor.u32 %v391, %v387
      %v393 = vrot.slane %v392, 4
      %v395 = vshll.u32 %v224, 16
      %v397 = vrot.slane %v395, 5
      %v398 = vsel %vm230, %v393, %v397
      %v400 = vshrl.u32 %v215, 16
      %v402 = vrot.slane %v400, 4
      %v403 = vshll.u32 %v215, 16
      %v405 = vrot.slane %v403, 5
      %v406 = vor.u32 %v402, %v405
      %v407 = vrot.slane %v406, 4
      %v409 = vshll.u32 %v216, 16
      %v411 = vrot.slane %v409, 5
      %v412 = vsel %vm230, %v407, %v411
      %v413 = vshrl.u32 %v216, 16
      %v415 = vrot.slane %v413, 4
      %v416 = vor.u32 %v415, %v411
      %v417 = vrot.slane %v416, 4
      %v419 = vshll.u32 %v225, 16
      %v421 = vrot.slane %v419, 5
      %v422 = vsel %vm230, %v417, %v421
      %v423 = vunpack.c.l.b16 %v244
      %v424 = vunpack.c.l.b16 %v254
      %v425 = vunpack.c.l.b16 %v268
      %v426 = vunpack.c.l.b16 %v278
      %v427 = vunpack.c.l.b16 %v292
      %v428 = vunpack.c.l.b16 %v302
      %v429 = vunpack.c.l.b16 %v316
      %v430 = vunpack.c.l.b16 %v326
      %v431 = vunpack.c.l.b16 %v340
      %v432 = vunpack.c.l.b16 %v350
      %v433 = vunpack.c.l.b16 %v364
      %v434 = vunpack.c.l.b16 %v374
      %v435 = vunpack.c.l.b16 %v388
      %v436 = vunpack.c.l.b16 %v398
      %v437 = vunpack.c.l.b16 %v412
      %v438 = vunpack.c.l.b16 %v422
      %v439 = vpack.c.b16 %v424, %v423
      %v440 = vpack.c.b16 %v426, %v425
      %v441 = vpack.c.b16 %v428, %v427
      %v442 = vpack.c.b16 %v430, %v429
      %v443 = vpack.c.b16 %v432, %v431
      %v444 = vpack.c.b16 %v434, %v433
      %v445 = vpack.c.b16 %v436, %v435
      %v446 = vpack.c.b16 %v438, %v437
      %vm447 = vcmask 31744
      %v449 = vsel %vm447, %v439, 0
      %v452 = vsel %vm447, %v440, 0
      %v455 = vsel %vm447, %v441, 0
      %v458 = vsel %vm447, %v442, 0
      %v461 = vsel %vm447, %v443, 0
      %v464 = vsel %vm447, %v444, 0
      %v467 = vsel %vm447, %v445, 0
      %v470 = vsel %vm447, %v446, 0
      %vm472 = vcmask 1041408
      %v474 = vsel %vm472, %v227, 0
      %476 = vmatprep.subr.bf16.mxu0 0
      %477 = vmatpush1.bf16.msra.mxu0 %v474
      %478 = vmatprep.subr.bf16.mxu0 0
      %479 = vmatpush1.bf16.msra.mxu0 0
      %480 = vmatprep.subr.bf16.mxu0 0
      %481 = vmatpush1.bf16.msra.mxu0 0
      %482 = vmatprep.subr.bf16.mxu0 0
      %483 = vmatpush1.bf16.msra.mxu0 0
      %484 = vmatprep.subr.bf16.mxu0 0
      %485 = vmatpush1.bf16.msra.mxu0 0
      %486 = vmatprep.subr.bf16.mxu0 0
      %487 = vmatpush1.bf16.msra.mxu0 0
      %488 = vmatprep.subr.bf16.mxu0 0
      %489 = vmatpush1.bf16.msra.mxu0 0
      %490 = vmatprep.subr.bf16.mxu0 0
      %491 = vmatpush1.bf16.msra.mxu0 0
      %492 = vmatprep.subr.bf16.mxu0 0
      %493 = vmatpush1.bf16.msra.mxu0 0
      %494 = vmatprep.subr.bf16.mxu0 0
      %495 = vmatpush1.bf16.msra.mxu0 0
      %496 = vmatprep.subr.bf16.mxu0 0
      %497 = vmatpush1.bf16.msra.mxu0 0
      %498 = vmatprep.subr.bf16.mxu0 0
      %499 = vmatpush1.bf16.msra.mxu0 0
      %500 = vmatprep.subr.bf16.mxu0 0
      %501 = vmatpush1.bf16.msra.mxu0 0
      %502 = vmatprep.subr.bf16.mxu0 0
      %503 = vmatpush1.bf16.msra.mxu0 0
      %504 = vmatprep.subr.bf16.mxu0 0
      %505 = vmatpush1.bf16.msra.mxu0 0
      %506 = vmatprep.subr.bf16.mxu0 0
      %507 = vmatpush1.bf16.msra.mxu0 0
      %508 = vmatprep.mubr.bf16.mxu0 0
      %509 = vmatmul.mubr.bf16.gmra.mrb[0].mxu0 %v449
      %v510 = vpop.f32.mrb[0].mxu0
      %v511 = vadd.f32 0.0, %v510
      %v512 = vpop.f32.mrb[0].mxu0
      %v513 = vpop.f32.mrb[0].mxu0
      %v514 = vadd.f32 0.0, %v513
      %v515 = vpop.f32.mrb[0].mxu0
      %516 = vmatprep.mubr.bf16.mxu0 0
      %517 = vmatmul.mubr.bf16.gmra.mrb[0].mxu0 %v452
      %v518 = vpop.f32.mrb[0].mxu0
      %v519 = vadd.f32 0.0, %v518
      %v520 = vpop.f32.mrb[0].mxu0
      %v521 = vpop.f32.mrb[0].mxu0
      %v522 = vadd.f32 0.0, %v521
      %v523 = vpop.f32.mrb[0].mxu0
      %524 = vmatprep.mubr.bf16.mxu0 0
      %525 = vmatmul.mubr.bf16.gmra.mrb[0].mxu0 %v455
      %v526 = vpop.f32.mrb[0].mxu0
      %v527 = vadd.f32 0.0, %v526
      %v528 = vpop.f32.mrb[0].mxu0
      %v529 = vpop.f32.mrb[0].mxu0
      %v530 = vadd.f32 0.0, %v529
      %v531 = vpop.f32.mrb[0].mxu0
      %532 = vmatprep.mubr.bf16.mxu0 0
      %533 = vmatmul.mubr.bf16.gmra.mrb[0].mxu0 %v458
      %v534 = vpop.f32.mrb[0].mxu0
      %v535 = vadd.f32 0.0, %v534
      %v536 = vpop.f32.mrb[0].mxu0
      %v537 = vpop.f32.mrb[0].mxu0
      %v538 = vadd.f32 0.0, %v537
      %v539 = vpop.f32.mrb[0].mxu0
      %540 = vmatprep.mubr.bf16.mxu0 0
      %541 = vmatmul.mubr.bf16.gmra.mrb[0].mxu0 %v461
      %v542 = vpop.f32.mrb[0].mxu0
      %v543 = vadd.f32 0.0, %v542
      %v544 = vpop.f32.mrb[0].mxu0
      %v545 = vpop.f32.mrb[0].mxu0
      %v546 = vadd.f32 0.0, %v545
      %v547 = vpop.f32.mrb[0].mxu0
      %548 = vmatprep.mubr.bf16.mxu0 0
      %549 = vmatmul.mubr.bf16.gmra.mrb[0].mxu0 %v464
      %v550 = vpop.f32.mrb[0].mxu0
      %v551 = vadd.f32 0.0, %v550
      %v552 = vpop.f32.mrb[0].mxu0
      %v553 = vpop.f32.mrb[0].mxu0
      %v554 = vadd.f32 0.0, %v553
      %v555 = vpop.f32.mrb[0].mxu0
      %556 = vmatprep.mubr.bf16.mxu0 0
      %557 = vmatmul.mubr.bf16.gmra.mrb[0].mxu0 %v467
      %v558 = vpop.f32.mrb[0].mxu0
      %v559 = vadd.f32 0.0, %v558
      %v560 = vpop.f32.mrb[0].mxu0
      %v561 = vpop.f32.mrb[0].mxu0
      %v562 = vadd.f32 0.0, %v561
      %v563 = vpop.f32.mrb[0].mxu0
      %564 = vmatprep.mubr.bf16.mxu0 0
      %565 = vmatmul.mubr.bf16.gmra.mrb[0].mxu0 %v470
      %v566 = vpop.f32.mrb[0].mxu0
      %v567 = vadd.f32 0.0, %v566
      %v568 = vpop.f32.mrb[0].mxu0
      %v569 = vpop.f32.mrb[0].mxu0
      %v570 = vadd.f32 0.0, %v569
      %v571 = vpop.f32.mrb[0].mxu0
      %572 = vdwg.mxu0
      %v589 = vunpack.c.l.b16 %v201
      %v590 = vunpack.c.l.b16 %v202
      %v591 = vunpack.c.l.b16 %v203
      %v592 = vunpack.c.l.b16 %v204
      %v593 = vunpack.c.l.b16 %v205
      %v594 = vunpack.c.l.b16 %v206
      %v595 = vunpack.c.l.b16 %v207
      %v596 = vunpack.c.l.b16 %v208
      %v597 = vunpack.c.l.b16 %v209
      %v598 = vunpack.c.l.b16 %v210
      %v599 = vunpack.c.l.b16 %v211
      %v600 = vunpack.c.l.b16 %v212
      %v601 = vunpack.c.l.b16 %v213
      %v602 = vunpack.c.l.b16 %v214
      %v603 = vunpack.c.l.b16 %v215
      %v604 = vunpack.c.l.b16 %v216
      %v605 = vpack.c.b16 %v590, %v589
      %v606 = vpack.c.b16 %v592, %v591
      %v607 = vpack.c.b16 %v594, %v593
      %v608 = vpack.c.b16 %v596, %v595
      %v609 = vpack.c.b16 %v598, %v597
      %v610 = vpack.c.b16 %v600, %v599
      %v611 = vpack.c.b16 %v602, %v601
      %v612 = vpack.c.b16 %v604, %v603
      %v614 = vsel %vm447, %v605, 0
      %v617 = vsel %vm447, %v606, 0
      %v620 = vsel %vm447, %v607, 0
      %v623 = vsel %vm447, %v608, 0
      %v626 = vsel %vm447, %v609, 0
      %v629 = vsel %vm447, %v610, 0
      %v632 = vsel %vm447, %v611, 0
      %v635 = vsel %vm447, %v612, 0
      %v638 = vsel %vm472, %v217, 0
      %640 = vmatprep.subr.bf16.mxu0 0
      %641 = vmatpush1.bf16.msra.mxu0 %v638
      %642 = vmatprep.subr.bf16.mxu0 0
      %643 = vmatpush1.bf16.msra.mxu0 0
      %644 = vmatprep.subr.bf16.mxu0 0
      %645 = vmatpush1.bf16.msra.mxu0 0
      %646 = vmatprep.subr.bf16.mxu0 0
      %647 = vmatpush1.bf16.msra.mxu0 0
      %648 = vmatprep.subr.bf16.mxu0 0
      %649 = vmatpush1.bf16.msra.mxu0 0
      %650 = vmatprep.subr.bf16.mxu0 0
      %651 = vmatpush1.bf16.msra.mxu0 0
      %652 = vmatprep.subr.bf16.mxu0 0
      %653 = vmatpush1.bf16.msra.mxu0 0
      %654 = vmatprep.subr.bf16.mxu0 0
      %655 = vmatpush1.bf16.msra.mxu0 0
      %656 = vmatprep.subr.bf16.mxu0 0
      %657 = vmatpush1.bf16.msra.mxu0 0
      %658 = vmatprep.subr.bf16.mxu0 0
      %659 = vmatpush1.bf16.msra.mxu0 0
      %660 = vmatprep.subr.bf16.mxu0 0
      %661 = vmatpush1.bf16.msra.mxu0 0
      %662 = vmatprep.subr.bf16.mxu0 0
      %663 = vmatpush1.bf16.msra.mxu0 0
      %664 = vmatprep.subr.bf16.mxu0 0
      %665 = vmatpush1.bf16.msra.mxu0 0
      %666 = vmatprep.subr.bf16.mxu0 0
      %667 = vmatpush1.bf16.msra.mxu0 0
      %668 = vmatprep.subr.bf16.mxu0 0
      %669 = vmatpush1.bf16.msra.mxu0 0
      %670 = vmatprep.subr.bf16.mxu0 0
      %671 = vmatpush1.bf16.msra.mxu0 0
      %672 = vmatprep.mubr.bf16.mxu0 0
      %673 = vmatmul.mubr.bf16.gmra.mrb[0].mxu0 %v614
      %v674 = vpop.f32.mrb[0].mxu0
      %v675 = vadd.f32 %v511, %v674
      %v676 = vpop.f32.mrb[0].mxu0
      %v677 = vpop.f32.mrb[0].mxu0
      %v678 = vadd.f32 %v514, %v677
      %v679 = vpop.f32.mrb[0].mxu0
      %680 = vmatprep.mubr.bf16.mxu0 0
      %681 = vmatmul.mubr.bf16.gmra.mrb[0].mxu0 %v617
      %v682 = vpop.f32.mrb[0].mxu0
      %v683 = vadd.f32 %v519, %v682
      %v684 = vpop.f32.mrb[0].mxu0
      %v685 = vpop.f32.mrb[0].mxu0
      %v686 = vadd.f32 %v522, %v685
      %v687 = vpop.f32.mrb[0].mxu0
      %688 = vmatprep.mubr.bf16.mxu0 0
      %689 = vmatmul.mubr.bf16.gmra.mrb[0].mxu0 %v620
      %v690 = vpop.f32.mrb[0].mxu0
      %v691 = vadd.f32 %v527, %v690
      %v692 = vpop.f32.mrb[0].mxu0
      %v693 = vpop.f32.mrb[0].mxu0
      %v694 = vadd.f32 %v530, %v693
      %v695 = vpop.f32.mrb[0].mxu0
      %696 = vmatprep.mubr.bf16.mxu0 0
      %697 = vmatmul.mubr.bf16.gmra.mrb[0].mxu0 %v623
      %v698 = vpop.f32.mrb[0].mxu0
      %v699 = vadd.f32 %v535, %v698
      %v700 = vpop.f32.mrb[0].mxu0
      %v701 = vpop.f32.mrb[0].mxu0
      %v702 = vadd.f32 %v538, %v701
      %v703 = vpop.f32.mrb[0].mxu0
      %704 = vmatprep.mubr.bf16.mxu0 0
      %705 = vmatmul.mubr.bf16.gmra.mrb[0].mxu0 %v626
      %v706 = vpop.f32.mrb[0].mxu0
      %v707 = vadd.f32 %v543, %v706
      %v708 = vpop.f32.mrb[0].mxu0
      %v709 = vpop.f32.mrb[0].mxu0
      %v710 = vadd.f32 %v546, %v709
      %v711 = vpop.f32.mrb[0].mxu0
      %712 = vmatprep.mubr.bf16.mxu0 0
      %713 = vmatmul.mubr.bf16.gmra.mrb[0].mxu0 %v629
      %v714 = vpop.f32.mrb[0].mxu0
      %v715 = vadd.f32 %v551, %v714
      %v716 = vpop.f32.mrb[0].mxu0
      %v717 = vpop.f32.mrb[0].mxu0
      %v718 = vadd.f32 %v554, %v717
      %v719 = vpop.f32.mrb[0].mxu0
      %720 = vmatprep.mubr.bf16.mxu0 0
      %721 = vmatmul.mubr.bf16.gmra.mrb[0].mxu0 %v632
      %v722 = vpop.f32.mrb[0].mxu0
      %v723 = vadd.f32 %v559, %v722
      %v724 = vpop.f32.mrb[0].mxu0
      %v725 = vpop.f32.mrb[0].mxu0
      %v726 = vadd.f32 %v562, %v725
      %v727 = vpop.f32.mrb[0].mxu0
      %728 = vmatprep.mubr.bf16.mxu0 0
      %729 = vmatmul.mubr.bf16.gmra.mrb[0].mxu0 %v635
      %v730 = vpop.f32.mrb[0].mxu0
      %v731 = vadd.f32 %v567, %v730
      %v732 = vpop.f32.mrb[0].mxu0
      %v733 = vpop.f32.mrb[0].mxu0
      %v734 = vadd.f32 %v570, %v733
      %v735 = vpop.f32.mrb[0].mxu0
      %736 = vdwg.mxu0
      %v737 = vld [vmem:[%s200] sm:$0xe]
      %v738 = vld [vmem:[%s200 + $0xc] sm:$0xe]
      %v739 = vld [vmem:[%s200 + $0x18] sm:$0xe]
      %v740 = vld [vmem:[%s200 + $0x24] sm:$0xe]
      %v741 = vld [vmem:[%s200 + $0x30] sm:$0xe]
      %v742 = vld [vmem:[%s200 + $0x3c] sm:$0xe]
      %v743 = vld [vmem:[%s200 + $0x48] sm:$0xe]
      %v744 = vld [vmem:[%s200 + $0x54] sm:$0xe]
      %s745 = scalar_lea.vmem %s1, 4
      %v746 = vld [vmem:[%s745] sm:$0x3]
      %vm763 = vcmask 1042432
      %vm764 = vcmask 1046532
      %vm765 = vmor %vm763, %vm764
      %v766 = vrot.slane %v737, 5
      %v767 = vrot.slane %v766, 4
      %v768 = vrot.slane %v202, 5
      %v769 = vsel %vm765, %v767, %v768
      %v770 = vrot.slane %v768, 4
      %v771 = vrot.slane %v218, 5
      %v772 = vsel %vm765, %v770, %v771
      %v773 = vrot.slane %v738, 5
      %v774 = vrot.slane %v773, 4
      %v775 = vrot.slane %v204, 5
      %v776 = vsel %vm765, %v774, %v775
      %v777 = vrot.slane %v775, 4
      %v778 = vrot.slane %v219, 5
      %v779 = vsel %vm765, %v777, %v778
      %v780 = vrot.slane %v739, 5
      %v781 = vrot.slane %v780, 4
      %v782 = vrot.slane %v206, 5
      %v783 = vsel %vm765, %v781, %v782
      %v784 = vrot.slane %v782, 4
      %v785 = vrot.slane %v220, 5
      %v786 = vsel %vm765, %v784, %v785
      %v787 = vrot.slane %v740, 5
      %v788 = vrot.slane %v787, 4
      %v789 = vrot.slane %v208, 5
      %v790 = vsel %vm765, %v788, %v789
      %v791 = vrot.slane %v789, 4
      %v792 = vrot.slane %v221, 5
      %v793 = vsel %vm765, %v791, %v792
      %v794 = vrot.slane %v741, 5
      %v795 = vrot.slane %v794, 4
      %v796 = vrot.slane %v210, 5
      %v797 = vsel %vm765, %v795, %v796
      %v798 = vrot.slane %v796, 4
      %v799 = vrot.slane %v222, 5
      %v800 = vsel %vm765, %v798, %v799
      %v801 = vrot.slane %v742, 5
      %v802 = vrot.slane %v801, 4
      %v803 = vrot.slane %v212, 5
      %v804 = vsel %vm765, %v802, %v803
      %v805 = vrot.slane %v803, 4
      %v806 = vrot.slane %v223, 5
      %v807 = vsel %vm765, %v805, %v806
      %v808 = vrot.slane %v743, 5
      %v809 = vrot.slane %v808, 4
      %v810 = vrot.slane %v214, 5
      %v811 = vsel %vm765, %v809, %v810
      %v812 = vrot.slane %v810, 4
      %v813 = vrot.slane %v224, 5
      %v814 = vsel %vm765, %v812, %v813
      %v815 = vrot.slane %v744, 5
      %v816 = vrot.slane %v815, 4
      %v817 = vrot.slane %v216, 5
      %v818 = vsel %vm765, %v816, %v817
      %v819 = vrot.slane %v817, 4
      %v820 = vrot.slane %v225, 5
      %v821 = vsel %vm765, %v819, %v820
      %v822 = vunpack.c.l.b16 %v769
      %v823 = vunpack.c.l.b16 %v772
      %v824 = vunpack.c.l.b16 %v776
      %v825 = vunpack.c.l.b16 %v779
      %v826 = vunpack.c.l.b16 %v783
      %v827 = vunpack.c.l.b16 %v786
      %v828 = vunpack.c.l.b16 %v790
      %v829 = vunpack.c.l.b16 %v793
      %v830 = vunpack.c.l.b16 %v797
      %v831 = vunpack.c.l.b16 %v800
      %v832 = vunpack.c.l.b16 %v804
      %v833 = vunpack.c.l.b16 %v807
      %v834 = vunpack.c.l.b16 %v811
      %v835 = vunpack.c.l.b16 %v814
      %v836 = vunpack.c.l.b16 %v818
      %v837 = vunpack.c.l.b16 %v821
      %v838 = vpack.c.b16 %v823, %v822
      %v839 = vpack.c.b16 %v825, %v824
      %v840 = vpack.c.b16 %v827, %v826
      %v841 = vpack.c.b16 %v829, %v828
      %v842 = vpack.c.b16 %v831, %v830
      %v843 = vpack.c.b16 %v833, %v832
      %v844 = vpack.c.b16 %v835, %v834
      %v845 = vpack.c.b16 %v837, %v836
      %v847 = vsel %vm447, %v838, 0
      %v850 = vsel %vm447, %v839, 0
      %v853 = vsel %vm447, %v840, 0
      %v856 = vsel %vm447, %v841, 0
      %v859 = vsel %vm447, %v842, 0
      %v862 = vsel %vm447, %v843, 0
      %v865 = vsel %vm447, %v844, 0
      %v868 = vsel %vm447, %v845, 0
      %v871 = vsel %vm472, %v746, 0
      %873 = vmatprep.subr.bf16.mxu0 0
      %874 = vmatpush1.bf16.msra.mxu0 %v871
      %875 = vmatprep.subr.bf16.mxu0 0
      %876 = vmatpush1.bf16.msra.mxu0 0
      %877 = vmatprep.subr.bf16.mxu0 0
      %878 = vmatpush1.bf16.msra.mxu0 0
      %879 = vmatprep.subr.bf16.mxu0 0
      %880 = vmatpush1.bf16.msra.mxu0 0
      %881 = vmatprep.subr.bf16.mxu0 0
      %882 = vmatpush1.bf16.msra.mxu0 0
      %883 = vmatprep.subr.bf16.mxu0 0
      %884 = vmatpush1.bf16.msra.mxu0 0
      %885 = vmatprep.subr.bf16.mxu0 0
      %886 = vmatpush1.bf16.msra.mxu0 0
      %887 = vmatprep.subr.bf16.mxu0 0
      %888 = vmatpush1.bf16.msra.mxu0 0
      %889 = vmatprep.subr.bf16.mxu0 0
      %890 = vmatpush1.bf16.msra.mxu0 0
      %891 = vmatprep.subr.bf16.mxu0 0
      %892 = vmatpush1.bf16.msra.mxu0 0
      %893 = vmatprep.subr.bf16.mxu0 0
      %894 = vmatpush1.bf16.msra.mxu0 0
      %895 = vmatprep.subr.bf16.mxu0 0
      %896 = vmatpush1.bf16.msra.mxu0 0
      %897 = vmatprep.subr.bf16.mxu0 0
      %898 = vmatpush1.bf16.msra.mxu0 0
      %899 = vmatprep.subr.bf16.mxu0 0
      %900 = vmatpush1.bf16.msra.mxu0 0
      %901 = vmatprep.subr.bf16.mxu0 0
      %902 = vmatpush1.bf16.msra.mxu0 0
      %903 = vmatprep.subr.bf16.mxu0 0
      %904 = vmatpush1.bf16.msra.mxu0 0
      %905 = vmatprep.mubr.bf16.mxu0 0
      %906 = vmatmul.mubr.bf16.gmra.mrb[0].mxu0 %v847
      %v907 = vpop.f32.mrb[0].mxu0
      %v908 = vadd.f32 0.0, %v907
      %v909 = vpop.f32.mrb[0].mxu0
      %v910 = vpop.f32.mrb[0].mxu0
      %v911 = vadd.f32 0.0, %v910
      %v912 = vpop.f32.mrb[0].mxu0
      %913 = vmatprep.mubr.bf16.mxu0 0
      %914 = vmatmul.mubr.bf16.gmra.mrb[0].mxu0 %v850
      %v915 = vpop.f32.mrb[0].mxu0
      %v916 = vadd.f32 0.0, %v915
      %v917 = vpop.f32.mrb[0].mxu0
      %v918 = vpop.f32.mrb[0].mxu0
      %v919 = vadd.f32 0.0, %v918
      %v920 = vpop.f32.mrb[0].mxu0
      %921 = vmatprep.mubr.bf16.mxu0 0
      %922 = vmatmul.mubr.bf16.gmra.mrb[0].mxu0 %v853
      %v923 = vpop.f32.mrb[0].mxu0
      %v924 = vadd.f32 0.0, %v923
      %v925 = vpop.f32.mrb[0].mxu0
      %v926 = vpop.f32.mrb[0].mxu0
      %v927 = vadd.f32 0.0, %v926
      %v928 = vpop.f32.mrb[0].mxu0
      %929 = vmatprep.mubr.bf16.mxu0 0
      %930 = vmatmul.mubr.bf16.gmra.mrb[0].mxu0 %v856
      %v931 = vpop.f32.mrb[0].mxu0
      %v932 = vadd.f32 0.0, %v931
      %v933 = vpop.f32.mrb[0].mxu0
      %v934 = vpop.f32.mrb[0].mxu0
      %v935 = vadd.f32 0.0, %v934
      %v936 = vpop.f32.mrb[0].mxu0
      %937 = vmatprep.mubr.bf16.mxu0 0
      %938 = vmatmul.mubr.bf16.gmra.mrb[0].mxu0 %v859
      %v939 = vpop.f32.mrb[0].mxu0
      %v940 = vadd.f32 0.0, %v939
      %v941 = vpop.f32.mrb[0].mxu0
      %v942 = vpop.f32.mrb[0].mxu0
      %v943 = vadd.f32 0.0, %v942
      %v944 = vpop.f32.mrb[0].mxu0
      %945 = vmatprep.mubr.bf16.mxu0 0
      %946 = vmatmul.mubr.bf16.gmra.mrb[0].mxu0 %v862
      %v947 = vpop.f32.mrb[0].mxu0
      %v948 = vadd.f32 0.0, %v947
      %v949 = vpop.f32.mrb[0].mxu0
      %v950 = vpop.f32.mrb[0].mxu0
      %v951 = vadd.f32 0.0, %v950
      %v952 = vpop.f32.mrb[0].mxu0
      %953 = vmatprep.mubr.bf16.mxu0 0
      %954 = vmatmul.mubr.bf16.gmra.mrb[0].mxu0 %v865
      %v955 = vpop.f32.mrb[0].mxu0
      %v956 = vadd.f32 0.0, %v955
      %v957 = vpop.f32.mrb[0].mxu0
      %v958 = vpop.f32.mrb[0].mxu0
      %v959 = vadd.f32 0.0, %v958
      %v960 = vpop.f32.mrb[0].mxu0
      %961 = vmatprep.mubr.bf16.mxu0 0
      %962 = vmatmul.mubr.bf16.gmra.mrb[0].mxu0 %v868
      %v963 = vpop.f32.mrb[0].mxu0
      %v964 = vadd.f32 0.0, %v963
      %v965 = vpop.f32.mrb[0].mxu0
      %v966 = vpop.f32.mrb[0].mxu0
      %v967 = vadd.f32 0.0, %v966
      %v968 = vpop.f32.mrb[0].mxu0
      %969 = vdwg.mxu0
      %v970 = vadd.f32 %v675, %v908
      %v971 = vadd.f32 %v678, %v911
      %v972 = vadd.f32 %v683, %v916
      %v973 = vadd.f32 %v686, %v919
      %v974 = vadd.f32 %v691, %v924
      %v975 = vadd.f32 %v694, %v927
      %v976 = vadd.f32 %v699, %v932
      %v977 = vadd.f32 %v702, %v935
      %v978 = vadd.f32 %v707, %v940
      %v979 = vadd.f32 %v710, %v943
      %v980 = vadd.f32 %v715, %v948
      %v981 = vadd.f32 %v718, %v951
      %v982 = vadd.f32 %v723, %v956
      %v983 = vadd.f32 %v726, %v959
      %v984 = vadd.f32 %v731, %v964
      %v985 = vadd.f32 %v734, %v967
      %s986 = sadd.s32 %s197, 1
      %s987 = smul.u32 %s986, 3
      %s988 = smul.addr %s987, 4
      %s989 = scalar_lea.vmem %s184, %s988
      %v990 = vld [vmem:[%s989] sm:$0xf]
      %v991 = vld [vmem:[%s989 + $0x4] sm:$0xf]
      %v992 = vld [vmem:[%s989 + $0xc] sm:$0xf]
      %v993 = vld [vmem:[%s989 + $0x10] sm:$0xf]
      %v994 = vld [vmem:[%s989 + $0x18] sm:$0xf]
      %v995 = vld [vmem:[%s989 + $0x1c] sm:$0xf]
      %v996 = vld [vmem:[%s989 + $0x24] sm:$0xf]
      %v997 = vld [vmem:[%s989 + $0x28] sm:$0xf]
      %v998 = vld [vmem:[%s989 + $0x30] sm:$0xf]
      %v999 = vld [vmem:[%s989 + $0x34] sm:$0xf]
      %v1000 = vld [vmem:[%s989 + $0x3c] sm:$0xf]
      %v1001 = vld [vmem:[%s989 + $0x40] sm:$0xf]
      %v1002 = vld [vmem:[%s989 + $0x48] sm:$0xf]
      %v1003 = vld [vmem:[%s989 + $0x4c] sm:$0xf]
      %v1004 = vld [vmem:[%s989 + $0x54] sm:$0xf]
      %v1005 = vld [vmem:[%s989 + $0x58] sm:$0xf]
      %s1006 = scalar_lea.vmem %s1, 6
      %v1007 = vld [vmem:[%s1006] sm:$0x3]
      %v1024 = vunpack.c.l.b16 %v990
      %v1025 = vunpack.c.l.b16 %v991
      %v1026 = vunpack.c.l.b16 %v992
      %v1027 = vunpack.c.l.b16 %v993
      %v1028 = vunpack.c.l.b16 %v994
      %v1029 = vunpack.c.l.b16 %v995
      %v1030 = vunpack.c.l.b16 %v996
      %v1031 = vunpack.c.l.b16 %v997
      %v1032 = vunpack.c.l.b16 %v998
      %v1033 = vunpack.c.l.b16 %v999
      %v1034 = vunpack.c.l.b16 %v1000
      %v1035 = vunpack.c.l.b16 %v1001
      %v1036 = vunpack.c.l.b16 %v1002
      %v1037 = vunpack.c.l.b16 %v1003
      %v1038 = vunpack.c.l.b16 %v1004
      %v1039 = vunpack.c.l.b16 %v1005
      %v1040 = vpack.c.b16 %v1025, %v1024
      %v1041 = vpack.c.b16 %v1027, %v1026
      %v1042 = vpack.c.b16 %v1029, %v1028
      %v1043 = vpack.c.b16 %v1031, %v1030
      %v1044 = vpack.c.b16 %v1033, %v1032
      %v1045 = vpack.c.b16 %v1035, %v1034
      %v1046 = vpack.c.b16 %v1037, %v1036
      %v1047 = vpack.c.b16 %v1039, %v1038
      %v1049 = vsel %vm447, %v1040, 0
      %v1052 = vsel %vm447, %v1041, 0
      %v1055 = vsel %vm447, %v1042, 0
      %v1058 = vsel %vm447, %v1043, 0
      %v1061 = vsel %vm447, %v1044, 0
      %v1064 = vsel %vm447, %v1045, 0
      %v1067 = vsel %vm447, %v1046, 0
      %v1070 = vsel %vm447, %v1047, 0
      %v1073 = vsel %vm472, %v1007, 0
      %1075 = vmatprep.subr.bf16.mxu0 0
      %1076 = vmatpush1.bf16.msra.mxu0 %v1073
      %1077 = vmatprep.subr.bf16.mxu0 0
      %1078 = vmatpush1.bf16.msra.mxu0 0
      %1079 = vmatprep.subr.bf16.mxu0 0
      %1080 = vmatpush1.bf16.msra.mxu0 0
      %1081 = vmatprep.subr.bf16.mxu0 0
      %1082 = vmatpush1.bf16.msra.mxu0 0
      %1083 = vmatprep.subr.bf16.mxu0 0
      %1084 = vmatpush1.bf16.msra.mxu0 0
      %1085 = vmatprep.subr.bf16.mxu0 0
      %1086 = vmatpush1.bf16.msra.mxu0 0
      %1087 = vmatprep.subr.bf16.mxu0 0
      %1088 = vmatpush1.bf16.msra.mxu0 0
      %1089 = vmatprep.subr.bf16.mxu0 0
      %1090 = vmatpush1.bf16.msra.mxu0 0
      %1091 = vmatprep.subr.bf16.mxu0 0
      %1092 = vmatpush1.bf16.msra.mxu0 0
      %1093 = vmatprep.subr.bf16.mxu0 0
      %1094 = vmatpush1.bf16.msra.mxu0 0
      %1095 = vmatprep.subr.bf16.mxu0 0
      %1096 = vmatpush1.bf16.msra.mxu0 0
      %1097 = vmatprep.subr.bf16.mxu0 0
      %1098 = vmatpush1.bf16.msra.mxu0 0
      %1099 = vmatprep.subr.bf16.mxu0 0
      %1100 = vmatpush1.bf16.msra.mxu0 0
      %1101 = vmatprep.subr.bf16.mxu0 0
      %1102 = vmatpush1.bf16.msra.mxu0 0
      %1103 = vmatprep.subr.bf16.mxu0 0
      %1104 = vmatpush1.bf16.msra.mxu0 0
      %1105 = vmatprep.subr.bf16.mxu0 0
      %1106 = vmatpush1.bf16.msra.mxu0 0
      %1107 = vmatprep.mubr.bf16.mxu0 0
      %1108 = vmatmul.mubr.bf16.gmra.mrb[0].mxu0 %v1049
      %v1109 = vpop.f32.mrb[0].mxu0
      %v1110 = vadd.f32 0.0, %v1109
      %v1111 = vpop.f32.mrb[0].mxu0
      %v1112 = vpop.f32.mrb[0].mxu0
      %v1113 = vadd.f32 0.0, %v1112
      %v1114 = vpop.f32.mrb[0].mxu0
      %1115 = vmatprep.mubr.bf16.mxu0 0
      %1116 = vmatmul.mubr.bf16.gmra.mrb[0].mxu0 %v1052
      %v1117 = vpop.f32.mrb[0].mxu0
      %v1118 = vadd.f32 0.0, %v1117
      %v1119 = vpop.f32.mrb[0].mxu0
      %v1120 = vpop.f32.mrb[0].mxu0
      %v1121 = vadd.f32 0.0, %v1120
      %v1122 = vpop.f32.mrb[0].mxu0
      %1123 = vmatprep.mubr.bf16.mxu0 0
      %1124 = vmatmul.mubr.bf16.gmra.mrb[0].mxu0 %v1055
      %v1125 = vpop.f32.mrb[0].mxu0
      %v1126 = vadd.f32 0.0, %v1125
      %v1127 = vpop.f32.mrb[0].mxu0
      %v1128 = vpop.f32.mrb[0].mxu0
      %v1129 = vadd.f32 0.0, %v1128
      %v1130 = vpop.f32.mrb[0].mxu0
      %1131 = vmatprep.mubr.bf16.mxu0 0
      %1132 = vmatmul.mubr.bf16.gmra.mrb[0].mxu0 %v1058
      %v1133 = vpop.f32.mrb[0].mxu0
      %v1134 = vadd.f32 0.0, %v1133
      %v1135 = vpop.f32.mrb[0].mxu0
      %v1136 = vpop.f32.mrb[0].mxu0
      %v1137 = vadd.f32 0.0, %v1136
      %v1138 = vpop.f32.mrb[0].mxu0
      %1139 = vmatprep.mubr.bf16.mxu0 0
      %1140 = vmatmul.mubr.bf16.gmra.mrb[0].mxu0 %v1061
      %v1141 = vpop.f32.mrb[0].mxu0
      %v1142 = vadd.f32 0.0, %v1141
      %v1143 = vpop.f32.mrb[0].mxu0
      %v1144 = vpop.f32.mrb[0].mxu0
      %v1145 = vadd.f32 0.0, %v1144
      %v1146 = vpop.f32.mrb[0].mxu0
      %1147 = vmatprep.mubr.bf16.mxu0 0
      %1148 = vmatmul.mubr.bf16.gmra.mrb[0].mxu0 %v1064
      %v1149 = vpop.f32.mrb[0].mxu0
      %v1150 = vadd.f32 0.0, %v1149
      %v1151 = vpop.f32.mrb[0].mxu0
      %v1152 = vpop.f32.mrb[0].mxu0
      %v1153 = vadd.f32 0.0, %v1152
      %v1154 = vpop.f32.mrb[0].mxu0
      %1155 = vmatprep.mubr.bf16.mxu0 0
      %1156 = vmatmul.mubr.bf16.gmra.mrb[0].mxu0 %v1067
      %v1157 = vpop.f32.mrb[0].mxu0
      %v1158 = vadd.f32 0.0, %v1157
      %v1159 = vpop.f32.mrb[0].mxu0
      %v1160 = vpop.f32.mrb[0].mxu0
      %v1161 = vadd.f32 0.0, %v1160
      %v1162 = vpop.f32.mrb[0].mxu0
      %1163 = vmatprep.mubr.bf16.mxu0 0
      %1164 = vmatmul.mubr.bf16.gmra.mrb[0].mxu0 %v1070
      %v1165 = vpop.f32.mrb[0].mxu0
      %v1166 = vadd.f32 0.0, %v1165
      %v1167 = vpop.f32.mrb[0].mxu0
      %v1168 = vpop.f32.mrb[0].mxu0
      %v1169 = vadd.f32 0.0, %v1168
      %v1170 = vpop.f32.mrb[0].mxu0
      %1171 = vdwg.mxu0
      %v1172 = vadd.f32 %v970, %v1110
      %v1173 = vadd.f32 %v971, %v1113
      %v1174 = vadd.f32 %v972, %v1118
      %v1175 = vadd.f32 %v973, %v1121
      %v1176 = vadd.f32 %v974, %v1126
      %v1177 = vadd.f32 %v975, %v1129
      %v1178 = vadd.f32 %v976, %v1134
      %v1179 = vadd.f32 %v977, %v1137
      %v1180 = vadd.f32 %v978, %v1142
      %v1181 = vadd.f32 %v979, %v1145
      %v1182 = vadd.f32 %v980, %v1150
      %v1183 = vadd.f32 %v981, %v1153
      %v1184 = vadd.f32 %v982, %v1158
      %v1185 = vadd.f32 %v983, %v1161
      %v1186 = vadd.f32 %v984, %v1166
      %v1187 = vadd.f32 %v985, %v1169
      %v1188 = vld [vmem:[%s989] sm:$0xf]
      %v1189 = vld [vmem:[%s989 + $0x4] sm:$0xf]
      %v1190 = vld [vmem:[%s989 + $0x8] sm:$0x1]
      %v1191 = vld [vmem:[%s989 + $0xc] sm:$0xf]
      %v1192 = vld [vmem:[%s989 + $0x10] sm:$0xf]
      %v1193 = vld [vmem:[%s989 + $0x14] sm:$0x1]
      %v1194 = vld [vmem:[%s989 + $0x18] sm:$0xf]
      %v1195 = vld [vmem:[%s989 + $0x1c] sm:$0xf]
      %v1196 = vld [vmem:[%s989 + $0x20] sm:$0x1]
      %v1197 = vld [vmem:[%s989 + $0x24] sm:$0xf]
      %v1198 = vld [vmem:[%s989 + $0x28] sm:$0xf]
      %v1199 = vld [vmem:[%s989 + $0x2c] sm:$0x1]
      %v1200 = vld [vmem:[%s989 + $0x30] sm:$0xf]
      %v1201 = vld [vmem:[%s989 + $0x34] sm:$0xf]
      %v1202 = vld [vmem:[%s989 + $0x38] sm:$0x1]
      %v1203 = vld [vmem:[%s989 + $0x3c] sm:$0xf]
      %v1204 = vld [vmem:[%s989 + $0x40] sm:$0xf]
      %v1205 = vld [vmem:[%s989 + $0x44] sm:$0x1]
      %v1206 = vld [vmem:[%s989 + $0x48] sm:$0xf]
      %v1207 = vld [vmem:[%s989 + $0x4c] sm:$0xf]
      %v1208 = vld [vmem:[%s989 + $0x50] sm:$0x1]
      %v1209 = vld [vmem:[%s989 + $0x54] sm:$0xf]
      %v1210 = vld [vmem:[%s989 + $0x58] sm:$0xf]
      %v1211 = vld [vmem:[%s989 + $0x5c] sm:$0x1]
      %s1212 = scalar_lea.vmem %s1, 8
      %v1213 = vld [vmem:[%s1212] sm:$0x3]
      %v1215 = vshrl.u32 %v1188, 16
      %v1217 = vrot.slane %v1215, 4
      %v1218 = vshll.u32 %v1188, 16
      %v1220 = vrot.slane %v1218, 5
      %v1221 = vor.u32 %v1217, %v1220
      %v1222 = vrot.slane %v1221, 4
      %v1224 = vshll.u32 %v1189, 16
      %v1226 = vrot.slane %v1224, 5
      %v1227 = vsel %vm230, %v1222, %v1226
      %v1228 = vshrl.u32 %v1189, 16
      %v1230 = vrot.slane %v1228, 4
      %v1231 = vor.u32 %v1230, %v1226
      %v1232 = vrot.slane %v1231, 4
      %v1234 = vshll.u32 %v1190, 16
      %v1236 = vrot.slane %v1234, 5
      %v1237 = vsel %vm230, %v1232, %v1236
      %v1239 = vshrl.u32 %v1191, 16
      %v1241 = vrot.slane %v1239, 4
      %v1242 = vshll.u32 %v1191, 16
      %v1244 = vrot.slane %v1242, 5
      %v1245 = vor.u32 %v1241, %v1244
      %v1246 = vrot.slane %v1245, 4
      %v1248 = vshll.u32 %v1192, 16
      %v1250 = vrot.slane %v1248, 5
      %v1251 = vsel %vm230, %v1246, %v1250
      %v1252 = vshrl.u32 %v1192, 16
      %v1254 = vrot.slane %v1252, 4
      %v1255 = vor.u32 %v1254, %v1250
      %v1256 = vrot.slane %v1255, 4
      %v1258 = vshll.u32 %v1193, 16
      %v1260 = vrot.slane %v1258, 5
      %v1261 = vsel %vm230, %v1256, %v1260
      %v1263 = vshrl.u32 %v1194, 16
      %v1265 = vrot.slane %v1263, 4
      %v1266 = vshll.u32 %v1194, 16
      %v1268 = vrot.slane %v1266, 5
      %v1269 = vor.u32 %v1265, %v1268
      %v1270 = vrot.slane %v1269, 4
      %v1272 = vshll.u32 %v1195, 16
      %v1274 = vrot.slane %v1272, 5
      %v1275 = vsel %vm230, %v1270, %v1274
      %v1276 = vshrl.u32 %v1195, 16
      %v1278 = vrot.slane %v1276, 4
      %v1279 = vor.u32 %v1278, %v1274
      %v1280 = vrot.slane %v1279, 4
      %v1282 = vshll.u32 %v1196, 16
      %v1284 = vrot.slane %v1282, 5
      %v1285 = vsel %vm230, %v1280, %v1284
      %v1287 = vshrl.u32 %v1197, 16
      %v1289 = vrot.slane %v1287, 4
      %v1290 = vshll.u32 %v1197, 16
      %v1292 = vrot.slane %v1290, 5
      %v1293 = vor.u32 %v1289, %v1292
      %v1294 = vrot.slane %v1293, 4
      %v1296 = vshll.u32 %v1198, 16
      %v1298 = vrot.slane %v1296, 5
      %v1299 = vsel %vm230, %v1294, %v1298
      %v1300 = vshrl.u32 %v1198, 16
      %v1302 = vrot.slane %v1300, 4
      %v1303 = vor.u32 %v1302, %v1298
      %v1304 = vrot.slane %v1303, 4
      %v1306 = vshll.u32 %v1199, 16
      %v1308 = vrot.slane %v1306, 5
      %v1309 = vsel %vm230, %v1304, %v1308
      %v1311 = vshrl.u32 %v1200, 16
      %v1313 = vrot.slane %v1311, 4
      %v1314 = vshll.u32 %v1200, 16
      %v1316 = vrot.slane %v1314, 5
      %v1317 = vor.u32 %v1313, %v1316
      %v1318 = vrot.slane %v1317, 4
      %v1320 = vshll.u32 %v1201, 16
      %v1322 = vrot.slane %v1320, 5
      %v1323 = vsel %vm230, %v1318, %v1322
      %v1324 = vshrl.u32 %v1201, 16
      %v1326 = vrot.slane %v1324, 4
      %v1327 = vor.u32 %v1326, %v1322
      %v1328 = vrot.slane %v1327, 4
      %v1330 = vshll.u32 %v1202, 16
      %v1332 = vrot.slane %v1330, 5
      %v1333 = vsel %vm230, %v1328, %v1332
      %v1335 = vshrl.u32 %v1203, 16
      %v1337 = vrot.slane %v1335, 4
      %v1338 = vshll.u32 %v1203, 16
      %v1340 = vrot.slane %v1338, 5
      %v1341 = vor.u32 %v1337, %v1340
      %v1342 = vrot.slane %v1341, 4
      %v1344 = vshll.u32 %v1204, 16
      %v1346 = vrot.slane %v1344, 5
      %v1347 = vsel %vm230, %v1342, %v1346
      %v1348 = vshrl.u32 %v1204, 16
      %v1350 = vrot.slane %v1348, 4
      %v1351 = vor.u32 %v1350, %v1346
      %v1352 = vrot.slane %v1351, 4
      %v1354 = vshll.u32 %v1205, 16
      %v1356 = vrot.slane %v1354, 5
      %v1357 = vsel %vm230, %v1352, %v1356
      %v1359 = vshrl.u32 %v1206, 16
      %v1361 = vrot.slane %v1359, 4
      %v1362 = vshll.u32 %v1206, 16
      %v1364 = vrot.slane %v1362, 5
      %v1365 = vor.u32 %v1361, %v1364
      %v1366 = vrot.slane %v1365, 4
      %v1368 = vshll.u32 %v1207, 16
      %v1370 = vrot.slane %v1368, 5
      %v1371 = vsel %vm230, %v1366, %v1370
      %v1372 = vshrl.u32 %v1207, 16
      %v1374 = vrot.slane %v1372, 4
      %v1375 = vor.u32 %v1374, %v1370
      %v1376 = vrot.slane %v1375, 4
      %v1378 = vshll.u32 %v1208, 16
      %v1380 = vrot.slane %v1378, 5
      %v1381 = vsel %vm230, %v1376, %v1380
      %v1383 = vshrl.u32 %v1209, 16
      %v1385 = vrot.slane %v1383, 4
      %v1386 = vshll.u32 %v1209, 16
      %v1388 = vrot.slane %v1386, 5
      %v1389 = vor.u32 %v1385, %v1388
      %v1390 = vrot.slane %v1389, 4
      %v1392 = vshll.u32 %v1210, 16
      %v1394 = vrot.slane %v1392, 5
      %v1395 = vsel %vm230, %v1390, %v1394
      %v1396 = vshrl.u32 %v1210, 16
      %v1398 = vrot.slane %v1396, 4
      %v1399 = vor.u32 %v1398, %v1394
      %v1400 = vrot.slane %v1399, 4
      %v1402 = vshll.u32 %v1211, 16
      %v1404 = vrot.slane %v1402, 5
      %v1405 = vsel %vm230, %v1400, %v1404
      %v1406 = vunpack.c.l.b16 %v1227
      %v1407 = vunpack.c.l.b16 %v1237
      %v1408 = vunpack.c.l.b16 %v1251
      %v1409 = vunpack.c.l.b16 %v1261
      %v1410 = vunpack.c.l.b16 %v1275
      %v1411 = vunpack.c.l.b16 %v1285
      %v1412 = vunpack.c.l.b16 %v1299
      %v1413 = vunpack.c.l.b16 %v1309
      %v1414 = vunpack.c.l.b16 %v1323
      %v1415 = vunpack.c.l.b16 %v1333
      %v1416 = vunpack.c.l.b16 %v1347
      %v1417 = vunpack.c.l.b16 %v1357
      %v1418 = vunpack.c.l.b16 %v1371
      %v1419 = vunpack.c.l.b16 %v1381
      %v1420 = vunpack.c.l.b16 %v1395
      %v1421 = vunpack.c.l.b16 %v1405
      %v1422 = vpack.c.b16 %v1407, %v1406
      %v1423 = vpack.c.b16 %v1409, %v1408
      %v1424 = vpack.c.b16 %v1411, %v1410
      %v1425 = vpack.c.b16 %v1413, %v1412
      %v1426 = vpack.c.b16 %v1415, %v1414
      %v1427 = vpack.c.b16 %v1417, %v1416
      %v1428 = vpack.c.b16 %v1419, %v1418
      %v1429 = vpack.c.b16 %v1421, %v1420
      %v1431 = vsel %vm447, %v1422, 0
      %v1434 = vsel %vm447, %v1423, 0
      %v1437 = vsel %vm447, %v1424, 0
      %v1440 = vsel %vm447, %v1425, 0
      %v1443 = vsel %vm447, %v1426, 0
      %v1446 = vsel %vm447, %v1427, 0
      %v1449 = vsel %vm447, %v1428, 0
      %v1452 = vsel %vm447, %v1429, 0
      %v1455 = vsel %vm472, %v1213, 0
      %1457 = vmatprep.subr.bf16.mxu0 0
      %1458 = vmatpush1.bf16.msra.mxu0 %v1455
      %1459 = vmatprep.subr.bf16.mxu0 0
      %1460 = vmatpush1.bf16.msra.mxu0 0
      %1461 = vmatprep.subr.bf16.mxu0 0
      %1462 = vmatpush1.bf16.msra.mxu0 0
      %1463 = vmatprep.subr.bf16.mxu0 0
      %1464 = vmatpush1.bf16.msra.mxu0 0
      %1465 = vmatprep.subr.bf16.mxu0 0
      %1466 = vmatpush1.bf16.msra.mxu0 0
      %1467 = vmatprep.subr.bf16.mxu0 0
      %1468 = vmatpush1.bf16.msra.mxu0 0
      %1469 = vmatprep.subr.bf16.mxu0 0
      %1470 = vmatpush1.bf16.msra.mxu0 0
      %1471 = vmatprep.subr.bf16.mxu0 0
      %1472 = vmatpush1.bf16.msra.mxu0 0
      %1473 = vmatprep.subr.bf16.mxu0 0
      %1474 = vmatpush1.bf16.msra.mxu0 0
      %1475 = vmatprep.subr.bf16.mxu0 0
      %1476 = vmatpush1.bf16.msra.mxu0 0
      %1477 = vmatprep.subr.bf16.mxu0 0
      %1478 = vmatpush1.bf16.msra.mxu0 0
      %1479 = vmatprep.subr.bf16.mxu0 0
      %1480 = vmatpush1.bf16.msra.mxu0 0
      %1481 = vmatprep.subr.bf16.mxu0 0
      %1482 = vmatpush1.bf16.msra.mxu0 0
      %1483 = vmatprep.subr.bf16.mxu0 0
      %1484 = vmatpush1.bf16.msra.mxu0 0
      %1485 = vmatprep.subr.bf16.mxu0 0
      %1486 = vmatpush1.bf16.msra.mxu0 0
      %1487 = vmatprep.subr.bf16.mxu0 0
      %1488 = vmatpush1.bf16.msra.mxu0 0
      %1489 = vmatprep.mubr.bf16.mxu0 0
      %1490 = vmatmul.mubr.bf16.gmra.mrb[0].mxu0 %v1431
      %v1491 = vpop.f32.mrb[0].mxu0
      %v1492 = vadd.f32 0.0, %v1491
      %v1493 = vpop.f32.mrb[0].mxu0
      %v1494 = vpop.f32.mrb[0].mxu0
      %v1495 = vadd.f32 0.0, %v1494
      %v1496 = vpop.f32.mrb[0].mxu0
      %1497 = vmatprep.mubr.bf16.mxu0 0
      %1498 = vmatmul.mubr.bf16.gmra.mrb[0].mxu0 %v1434
      %v1499 = vpop.f32.mrb[0].mxu0
      %v1500 = vadd.f32 0.0, %v1499
      %v1501 = vpop.f32.mrb[0].mxu0
      %v1502 = vpop.f32.mrb[0].mxu0
      %v1503 = vadd.f32 0.0, %v1502
      %v1504 = vpop.f32.mrb[0].mxu0
      %1505 = vmatprep.mubr.bf16.mxu0 0
      %1506 = vmatmul.mubr.bf16.gmra.mrb[0].mxu0 %v1437
      %v1507 = vpop.f32.mrb[0].mxu0
      %v1508 = vadd.f32 0.0, %v1507
      %v1509 = vpop.f32.mrb[0].mxu0
      %v1510 = vpop.f32.mrb[0].mxu0
      %v1511 = vadd.f32 0.0, %v1510
      %v1512 = vpop.f32.mrb[0].mxu0
      %1513 = vmatprep.mubr.bf16.mxu0 0
      %1514 = vmatmul.mubr.bf16.gmra.mrb[0].mxu0 %v1440
      %v1515 = vpop.f32.mrb[0].mxu0
      %v1516 = vadd.f32 0.0, %v1515
      %v1517 = vpop.f32.mrb[0].mxu0
      %v1518 = vpop.f32.mrb[0].mxu0
      %v1519 = vadd.f32 0.0, %v1518
      %v1520 = vpop.f32.mrb[0].mxu0
      %1521 = vmatprep.mubr.bf16.mxu0 0
      %1522 = vmatmul.mubr.bf16.gmra.mrb[0].mxu0 %v1443
      %v1523 = vpop.f32.mrb[0].mxu0
      %v1524 = vadd.f32 0.0, %v1523
      %v1525 = vpop.f32.mrb[0].mxu0
      %v1526 = vpop.f32.mrb[0].mxu0
      %v1527 = vadd.f32 0.0, %v1526
      %v1528 = vpop.f32.mrb[0].mxu0
      %1529 = vmatprep.mubr.bf16.mxu0 0
      %1530 = vmatmul.mubr.bf16.gmra.mrb[0].mxu0 %v1446
      %v1531 = vpop.f32.mrb[0].mxu0
      %v1532 = vadd.f32 0.0, %v1531
      %v1533 = vpop.f32.mrb[0].mxu0
      %v1534 = vpop.f32.mrb[0].mxu0
      %v1535 = vadd.f32 0.0, %v1534
      %v1536 = vpop.f32.mrb[0].mxu0
      %1537 = vmatprep.mubr.bf16.mxu0 0
      %1538 = vmatmul.mubr.bf16.gmra.mrb[0].mxu0 %v1449
      %v1539 = vpop.f32.mrb[0].mxu0
      %v1540 = vadd.f32 0.0, %v1539
      %v1541 = vpop.f32.mrb[0].mxu0
      %v1542 = vpop.f32.mrb[0].mxu0
      %v1543 = vadd.f32 0.0, %v1542
      %v1544 = vpop.f32.mrb[0].mxu0
      %1545 = vmatprep.mubr.bf16.mxu0 0
      %1546 = vmatmul.mubr.bf16.gmra.mrb[0].mxu0 %v1452
      %v1547 = vpop.f32.mrb[0].mxu0
      %v1548 = vadd.f32 0.0, %v1547
      %v1549 = vpop.f32.mrb[0].mxu0
      %v1550 = vpop.f32.mrb[0].mxu0
      %v1551 = vadd.f32 0.0, %v1550
      %v1552 = vpop.f32.mrb[0].mxu0
      %1553 = vdwg.mxu0
      %v1554 = vadd.f32 %v1172, %v1492
      %v1555 = vadd.f32 %v1173, %v1495
      %v1556 = vadd.f32 %v1174, %v1500
      %v1557 = vadd.f32 %v1175, %v1503
      %v1558 = vadd.f32 %v1176, %v1508
      %v1559 = vadd.f32 %v1177, %v1511
      %v1560 = vadd.f32 %v1178, %v1516
      %v1561 = vadd.f32 %v1179, %v1519
      %v1562 = vadd.f32 %v1180, %v1524
      %v1563 = vadd.f32 %v1181, %v1527
      %v1564 = vadd.f32 %v1182, %v1532
      %v1565 = vadd.f32 %v1183, %v1535
      %v1566 = vadd.f32 %v1184, %v1540
      %v1567 = vadd.f32 %v1185, %v1543
      %v1568 = vadd.f32 %v1186, %v1548
      %v1569 = vadd.f32 %v1187, %v1551
      %v1570 = vld [vmem:[%s989] sm:$0xe]
      %v1571 = vld [vmem:[%s989 + $0xc] sm:$0xe]
      %v1572 = vld [vmem:[%s989 + $0x18] sm:$0xe]
      %v1573 = vld [vmem:[%s989 + $0x24] sm:$0xe]
      %v1574 = vld [vmem:[%s989 + $0x30] sm:$0xe]
      %v1575 = vld [vmem:[%s989 + $0x3c] sm:$0xe]
      %v1576 = vld [vmem:[%s989 + $0x48] sm:$0xe]
      %v1577 = vld [vmem:[%s989 + $0x54] sm:$0xe]
      %s1578 = scalar_lea.vmem %s1, 10
      %v1579 = vld [vmem:[%s1578] sm:$0x3]
      %v1604 = vrot.slane %v1570, 5
      %v1605 = vrot.slane %v1604, 4
      %v1606 = vrot.slane %v1189, 5
      %v1607 = vsel %vm765, %v1605, %v1606
      %v1608 = vrot.slane %v1606, 4
      %v1609 = vrot.slane %v1190, 5
      %v1610 = vsel %vm765, %v1608, %v1609
      %v1611 = vrot.slane %v1571, 5
      %v1612 = vrot.slane %v1611, 4
      %v1613 = vrot.slane %v1192, 5
      %v1614 = vsel %vm765, %v1612, %v1613
      %v1615 = vrot.slane %v1613, 4
      %v1616 = vrot.slane %v1193, 5
      %v1617 = vsel %vm765, %v1615, %v1616
      %v1618 = vrot.slane %v1572, 5
      %v1619 = vrot.slane %v1618, 4
      %v1620 = vrot.slane %v1195, 5
      %v1621 = vsel %vm765, %v1619, %v1620
      %v1622 = vrot.slane %v1620, 4
      %v1623 = vrot.slane %v1196, 5
      %v1624 = vsel %vm765, %v1622, %v1623
      %v1625 = vrot.slane %v1573, 5
      %v1626 = vrot.slane %v1625, 4
      %v1627 = vrot.slane %v1198, 5
      %v1628 = vsel %vm765, %v1626, %v1627
      %v1629 = vrot.slane %v1627, 4
      %v1630 = vrot.slane %v1199, 5
      %v1631 = vsel %vm765, %v1629, %v1630
      %v1632 = vrot.slane %v1574, 5
      %v1633 = vrot.slane %v1632, 4
      %v1634 = vrot.slane %v1201, 5
      %v1635 = vsel %vm765, %v1633, %v1634
      %v1636 = vrot.slane %v1634, 4
      %v1637 = vrot.slane %v1202, 5
      %v1638 = vsel %vm765, %v1636, %v1637
      %v1639 = vrot.slane %v1575, 5
      %v1640 = vrot.slane %v1639, 4
      %v1641 = vrot.slane %v1204, 5
      %v1642 = vsel %vm765, %v1640, %v1641
      %v1643 = vrot.slane %v1641, 4
      %v1644 = vrot.slane %v1205, 5
      %v1645 = vsel %vm765, %v1643, %v1644
      %v1646 = vrot.slane %v1576, 5
      %v1647 = vrot.slane %v1646, 4
      %v1648 = vrot.slane %v1207, 5
      %v1649 = vsel %vm765, %v1647, %v1648
      %v1650 = vrot.slane %v1648, 4
      %v1651 = vrot.slane %v1208, 5
      %v1652 = vsel %vm765, %v1650, %v1651
      %v1653 = vrot.slane %v1577, 5
      %v1654 = vrot.slane %v1653, 4
      %v1655 = vrot.slane %v1210, 5
      %v1656 = vsel %vm765, %v1654, %v1655
      %v1657 = vrot.slane %v1655, 4
      %v1658 = vrot.slane %v1211, 5
      %v1659 = vsel %vm765, %v1657, %v1658
      %v1660 = vunpack.c.l.b16 %v1607
      %v1661 = vunpack.c.l.b16 %v1610
      %v1662 = vunpack.c.l.b16 %v1614
      %v1663 = vunpack.c.l.b16 %v1617
      %v1664 = vunpack.c.l.b16 %v1621
      %v1665 = vunpack.c.l.b16 %v1624
      %v1666 = vunpack.c.l.b16 %v1628
      %v1667 = vunpack.c.l.b16 %v1631
      %v1668 = vunpack.c.l.b16 %v1635
      %v1669 = vunpack.c.l.b16 %v1638
      %v1670 = vunpack.c.l.b16 %v1642
      %v1671 = vunpack.c.l.b16 %v1645
      %v1672 = vunpack.c.l.b16 %v1649
      %v1673 = vunpack.c.l.b16 %v1652
      %v1674 = vunpack.c.l.b16 %v1656
      %v1675 = vunpack.c.l.b16 %v1659
      %v1676 = vpack.c.b16 %v1661, %v1660
      %v1677 = vpack.c.b16 %v1663, %v1662
      %v1678 = vpack.c.b16 %v1665, %v1664
      %v1679 = vpack.c.b16 %v1667, %v1666
      %v1680 = vpack.c.b16 %v1669, %v1668
      %v1681 = vpack.c.b16 %v1671, %v1670
      %v1682 = vpack.c.b16 %v1673, %v1672
      %v1683 = vpack.c.b16 %v1675, %v1674
      %v1685 = vsel %vm447, %v1676, 0
      %v1688 = vsel %vm447, %v1677, 0
      %v1691 = vsel %vm447, %v1678, 0
      %v1694 = vsel %vm447, %v1679, 0
      %v1697 = vsel %vm447, %v1680, 0
      %v1700 = vsel %vm447, %v1681, 0
      %v1703 = vsel %vm447, %v1682, 0
      %v1706 = vsel %vm447, %v1683, 0
      %v1709 = vsel %vm472, %v1579, 0
      %1711 = vmatprep.subr.bf16.mxu0 0
      %1712 = vmatpush1.bf16.msra.mxu0 %v1709
      %1713 = vmatprep.subr.bf16.mxu0 0
      %1714 = vmatpush1.bf16.msra.mxu0 0
      %1715 = vmatprep.subr.bf16.mxu0 0
      %1716 = vmatpush1.bf16.msra.mxu0 0
      %1717 = vmatprep.subr.bf16.mxu0 0
      %1718 = vmatpush1.bf16.msra.mxu0 0
      %1719 = vmatprep.subr.bf16.mxu0 0
      %1720 = vmatpush1.bf16.msra.mxu0 0
      %1721 = vmatprep.subr.bf16.mxu0 0
      %1722 = vmatpush1.bf16.msra.mxu0 0
      %1723 = vmatprep.subr.bf16.mxu0 0
      %1724 = vmatpush1.bf16.msra.mxu0 0
      %1725 = vmatprep.subr.bf16.mxu0 0
      %1726 = vmatpush1.bf16.msra.mxu0 0
      %1727 = vmatprep.subr.bf16.mxu0 0
      %1728 = vmatpush1.bf16.msra.mxu0 0
      %1729 = vmatprep.subr.bf16.mxu0 0
      %1730 = vmatpush1.bf16.msra.mxu0 0
      %1731 = vmatprep.subr.bf16.mxu0 0
      %1732 = vmatpush1.bf16.msra.mxu0 0
      %1733 = vmatprep.subr.bf16.mxu0 0
      %1734 = vmatpush1.bf16.msra.mxu0 0
      %1735 = vmatprep.subr.bf16.mxu0 0
      %1736 = vmatpush1.bf16.msra.mxu0 0
      %1737 = vmatprep.subr.bf16.mxu0 0
      %1738 = vmatpush1.bf16.msra.mxu0 0
      %1739 = vmatprep.subr.bf16.mxu0 0
      %1740 = vmatpush1.bf16.msra.mxu0 0
      %1741 = vmatprep.subr.bf16.mxu0 0
      %1742 = vmatpush1.bf16.msra.mxu0 0
      %1743 = vmatprep.mubr.bf16.mxu0 0
      %1744 = vmatmul.mubr.bf16.gmra.mrb[0].mxu0 %v1685
      %v1745 = vpop.f32.mrb[0].mxu0
      %v1746 = vadd.f32 0.0, %v1745
      %v1747 = vpop.f32.mrb[0].mxu0
      %v1748 = vpop.f32.mrb[0].mxu0
      %v1749 = vadd.f32 0.0, %v1748
      %v1750 = vpop.f32.mrb[0].mxu0
      %1751 = vmatprep.mubr.bf16.mxu0 0
      %1752 = vmatmul.mubr.bf16.gmra.mrb[0].mxu0 %v1688
      %v1753 = vpop.f32.mrb[0].mxu0
      %v1754 = vadd.f32 0.0, %v1753
      %v1755 = vpop.f32.mrb[0].mxu0
      %v1756 = vpop.f32.mrb[0].mxu0
      %v1757 = vadd.f32 0.0, %v1756
      %v1758 = vpop.f32.mrb[0].mxu0
      %1759 = vmatprep.mubr.bf16.mxu0 0
      %1760 = vmatmul.mubr.bf16.gmra.mrb[0].mxu0 %v1691
      %v1761 = vpop.f32.mrb[0].mxu0
      %v1762 = vadd.f32 0.0, %v1761
      %v1763 = vpop.f32.mrb[0].mxu0
      %v1764 = vpop.f32.mrb[0].mxu0
      %v1765 = vadd.f32 0.0, %v1764
      %v1766 = vpop.f32.mrb[0].mxu0
      %1767 = vmatprep.mubr.bf16.mxu0 0
      %1768 = vmatmul.mubr.bf16.gmra.mrb[0].mxu0 %v1694
      %v1769 = vpop.f32.mrb[0].mxu0
      %v1770 = vadd.f32 0.0, %v1769
      %v1771 = vpop.f32.mrb[0].mxu0
      %v1772 = vpop.f32.mrb[0].mxu0
      %v1773 = vadd.f32 0.0, %v1772
      %v1774 = vpop.f32.mrb[0].mxu0
      %1775 = vmatprep.mubr.bf16.mxu0 0
      %1776 = vmatmul.mubr.bf16.gmra.mrb[0].mxu0 %v1697
      %v1777 = vpop.f32.mrb[0].mxu0
      %v1778 = vadd.f32 0.0, %v1777
      %v1779 = vpop.f32.mrb[0].mxu0
      %v1780 = vpop.f32.mrb[0].mxu0
      %v1781 = vadd.f32 0.0, %v1780
      %v1782 = vpop.f32.mrb[0].mxu0
      %1783 = vmatprep.mubr.bf16.mxu0 0
      %1784 = vmatmul.mubr.bf16.gmra.mrb[0].mxu0 %v1700
      %v1785 = vpop.f32.mrb[0].mxu0
      %v1786 = vadd.f32 0.0, %v1785
      %v1787 = vpop.f32.mrb[0].mxu0
      %v1788 = vpop.f32.mrb[0].mxu0
      %v1789 = vadd.f32 0.0, %v1788
      %v1790 = vpop.f32.mrb[0].mxu0
      %1791 = vmatprep.mubr.bf16.mxu0 0
      %1792 = vmatmul.mubr.bf16.gmra.mrb[0].mxu0 %v1703
      %v1793 = vpop.f32.mrb[0].mxu0
      %v1794 = vadd.f32 0.0, %v1793
      %v1795 = vpop.f32.mrb[0].mxu0
      %v1796 = vpop.f32.mrb[0].mxu0
      %v1797 = vadd.f32 0.0, %v1796
      %v1798 = vpop.f32.mrb[0].mxu0
      %1799 = vmatprep.mubr.bf16.mxu0 0
      %1800 = vmatmul.mubr.bf16.gmra.mrb[0].mxu0 %v1706
      %v1801 = vpop.f32.mrb[0].mxu0
      %v1802 = vadd.f32 0.0, %v1801
      %v1803 = vpop.f32.mrb[0].mxu0
      %v1804 = vpop.f32.mrb[0].mxu0
      %v1805 = vadd.f32 0.0, %v1804
      %v1806 = vpop.f32.mrb[0].mxu0
      %1807 = vdwg.mxu0
      %v1808 = vadd.f32 %v1554, %v1746
      %v1809 = vadd.f32 %v1555, %v1749
      %v1810 = vadd.f32 %v1556, %v1754
      %v1811 = vadd.f32 %v1557, %v1757
      %v1812 = vadd.f32 %v1558, %v1762
      %v1813 = vadd.f32 %v1559, %v1765
      %v1814 = vadd.f32 %v1560, %v1770
      %v1815 = vadd.f32 %v1561, %v1773
      %v1816 = vadd.f32 %v1562, %v1778
      %v1817 = vadd.f32 %v1563, %v1781
      %v1818 = vadd.f32 %v1564, %v1786
      %v1819 = vadd.f32 %v1565, %v1789
      %v1820 = vadd.f32 %v1566, %v1794
      %v1821 = vadd.f32 %v1567, %v1797
      %v1822 = vadd.f32 %v1568, %v1802
      %v1823 = vadd.f32 %v1569, %v1805
      %s1824 = sadd.s32 %s197, 2
      %s1825 = smul.u32 %s1824, 3
      %s1826 = smul.addr %s1825, 4
      %s1827 = scalar_lea.vmem %s184, %s1826
      %v1828 = vld [vmem:[%s1827] sm:$0xf]
      %v1829 = vld [vmem:[%s1827 + $0x4] sm:$0xf]
      %v1830 = vld [vmem:[%s1827 + $0xc] sm:$0xf]
      %v1831 = vld [vmem:[%s1827 + $0x10] sm:$0xf]
      %v1832 = vld [vmem:[%s1827 + $0x18] sm:$0xf]
      %v1833 = vld [vmem:[%s1827 + $0x1c] sm:$0xf]
      %v1834 = vld [vmem:[%s1827 + $0x24] sm:$0xf]
      %v1835 = vld [vmem:[%s1827 + $0x28] sm:$0xf]
      %v1836 = vld [vmem:[%s1827 + $0x30] sm:$0xf]
      %v1837 = vld [vmem:[%s1827 + $0x34] sm:$0xf]
      %v1838 = vld [vmem:[%s1827 + $0x3c] sm:$0xf]
      %v1839 = vld [vmem:[%s1827 + $0x40] sm:$0xf]
      %v1840 = vld [vmem:[%s1827 + $0x48] sm:$0xf]
      %v1841 = vld [vmem:[%s1827 + $0x4c] sm:$0xf]
      %v1842 = vld [vmem:[%s1827 + $0x54] sm:$0xf]
      %v1843 = vld [vmem:[%s1827 + $0x58] sm:$0xf]
      %s1844 = scalar_lea.vmem %s1, 12
      %v1845 = vld [vmem:[%s1844] sm:$0x3]
      %v1862 = vunpack.c.l.b16 %v1828
      %v1863 = vunpack.c.l.b16 %v1829
      %v1864 = vunpack.c.l.b16 %v1830
      %v1865 = vunpack.c.l.b16 %v1831
      %v1866 = vunpack.c.l.b16 %v1832
      %v1867 = vunpack.c.l.b16 %v1833
      %v1868 = vunpack.c.l.b16 %v1834
      %v1869 = vunpack.c.l.b16 %v1835
      %v1870 = vunpack.c.l.b16 %v1836
      %v1871 = vunpack.c.l.b16 %v1837
      %v1872 = vunpack.c.l.b16 %v1838
      %v1873 = vunpack.c.l.b16 %v1839
      %v1874 = vunpack.c.l.b16 %v1840
      %v1875 = vunpack.c.l.b16 %v1841
      %v1876 = vunpack.c.l.b16 %v1842
      %v1877 = vunpack.c.l.b16 %v1843
      %v1878 = vpack.c.b16 %v1863, %v1862
      %v1879 = vpack.c.b16 %v1865, %v1864
      %v1880 = vpack.c.b16 %v1867, %v1866
      %v1881 = vpack.c.b16 %v1869, %v1868
      %v1882 = vpack.c.b16 %v1871, %v1870
      %v1883 = vpack.c.b16 %v1873, %v1872
      %v1884 = vpack.c.b16 %v1875, %v1874
      %v1885 = vpack.c.b16 %v1877, %v1876
      %v1887 = vsel %vm447, %v1878, 0
      %v1890 = vsel %vm447, %v1879, 0
      %v1893 = vsel %vm447, %v1880, 0
      %v1896 = vsel %vm447, %v1881, 0
      %v1899 = vsel %vm447, %v1882, 0
      %v1902 = vsel %vm447, %v1883, 0
      %v1905 = vsel %vm447, %v1884, 0
      %v1908 = vsel %vm447, %v1885, 0
      %v1911 = vsel %vm472, %v1845, 0
      %1913 = vmatprep.subr.bf16.mxu0 0
      %1914 = vmatpush1.bf16.msra.mxu0 %v1911
      %1915 = vmatprep.subr.bf16.mxu0 0
      %1916 = vmatpush1.bf16.msra.mxu0 0
      %1917 = vmatprep.subr.bf16.mxu0 0
      %1918 = vmatpush1.bf16.msra.mxu0 0
      %1919 = vmatprep.subr.bf16.mxu0 0
      %1920 = vmatpush1.bf16.msra.mxu0 0
      %1921 = vmatprep.subr.bf16.mxu0 0
      %1922 = vmatpush1.bf16.msra.mxu0 0
      %1923 = vmatprep.subr.bf16.mxu0 0
      %1924 = vmatpush1.bf16.msra.mxu0 0
      %1925 = vmatprep.subr.bf16.mxu0 0
      %1926 = vmatpush1.bf16.msra.mxu0 0
      %1927 = vmatprep.subr.bf16.mxu0 0
      %1928 = vmatpush1.bf16.msra.mxu0 0
      %1929 = vmatprep.subr.bf16.mxu0 0
      %1930 = vmatpush1.bf16.msra.mxu0 0
      %1931 = vmatprep.subr.bf16.mxu0 0
      %1932 = vmatpush1.bf16.msra.mxu0 0
      %1933 = vmatprep.subr.bf16.mxu0 0
      %1934 = vmatpush1.bf16.msra.mxu0 0
      %1935 = vmatprep.subr.bf16.mxu0 0
      %1936 = vmatpush1.bf16.msra.mxu0 0
      %1937 = vmatprep.subr.bf16.mxu0 0
      %1938 = vmatpush1.bf16.msra.mxu0 0
      %1939 = vmatprep.subr.bf16.mxu0 0
      %1940 = vmatpush1.bf16.msra.mxu0 0
      %1941 = vmatprep.subr.bf16.mxu0 0
      %1942 = vmatpush1.bf16.msra.mxu0 0
      %1943 = vmatprep.subr.bf16.mxu0 0
      %1944 = vmatpush1.bf16.msra.mxu0 0
      %1945 = vmatprep.mubr.bf16.mxu0 0
      %1946 = vmatmul.mubr.bf16.gmra.mrb[0].mxu0 %v1887
      %v1947 = vpop.f32.mrb[0].mxu0
      %v1948 = vadd.f32 0.0, %v1947
      %v1949 = vpop.f32.mrb[0].mxu0
      %v1950 = vpop.f32.mrb[0].mxu0
      %v1951 = vadd.f32 0.0, %v1950
      %v1952 = vpop.f32.mrb[0].mxu0
      %1953 = vmatprep.mubr.bf16.mxu0 0
      %1954 = vmatmul.mubr.bf16.gmra.mrb[0].mxu0 %v1890
      %v1955 = vpop.f32.mrb[0].mxu0
      %v1956 = vadd.f32 0.0, %v1955
      %v1957 = vpop.f32.mrb[0].mxu0
      %v1958 = vpop.f32.mrb[0].mxu0
      %v1959 = vadd.f32 0.0, %v1958
      %v1960 = vpop.f32.mrb[0].mxu0
      %1961 = vmatprep.mubr.bf16.mxu0 0
      %1962 = vmatmul.mubr.bf16.gmra.mrb[0].mxu0 %v1893
      %v1963 = vpop.f32.mrb[0].mxu0
      %v1964 = vadd.f32 0.0, %v1963
      %v1965 = vpop.f32.mrb[0].mxu0
      %v1966 = vpop.f32.mrb[0].mxu0
      %v1967 = vadd.f32 0.0, %v1966
      %v1968 = vpop.f32.mrb[0].mxu0
      %1969 = vmatprep.mubr.bf16.mxu0 0
      %1970 = vmatmul.mubr.bf16.gmra.mrb[0].mxu0 %v1896
      %v1971 = vpop.f32.mrb[0].mxu0
      %v1972 = vadd.f32 0.0, %v1971
      %v1973 = vpop.f32.mrb[0].mxu0
      %v1974 = vpop.f32.mrb[0].mxu0
      %v1975 = vadd.f32 0.0, %v1974
      %v1976 = vpop.f32.mrb[0].mxu0
      %1977 = vmatprep.mubr.bf16.mxu0 0
      %1978 = vmatmul.mubr.bf16.gmra.mrb[0].mxu0 %v1899
      %v1979 = vpop.f32.mrb[0].mxu0
      %v1980 = vadd.f32 0.0, %v1979
      %v1981 = vpop.f32.mrb[0].mxu0
      %v1982 = vpop.f32.mrb[0].mxu0
      %v1983 = vadd.f32 0.0, %v1982
      %v1984 = vpop.f32.mrb[0].mxu0
      %1985 = vmatprep.mubr.bf16.mxu0 0
      %1986 = vmatmul.mubr.bf16.gmra.mrb[0].mxu0 %v1902
      %v1987 = vpop.f32.mrb[0].mxu0
      %v1988 = vadd.f32 0.0, %v1987
      %v1989 = vpop.f32.mrb[0].mxu0
      %v1990 = vpop.f32.mrb[0].mxu0
      %v1991 = vadd.f32 0.0, %v1990
      %v1992 = vpop.f32.mrb[0].mxu0
      %1993 = vmatprep.mubr.bf16.mxu0 0
      %1994 = vmatmul.mubr.bf16.gmra.mrb[0].mxu0 %v1905
      %v1995 = vpop.f32.mrb[0].mxu0
      %v1996 = vadd.f32 0.0, %v1995
      %v1997 = vpop.f32.mrb[0].mxu0
      %v1998 = vpop.f32.mrb[0].mxu0
      %v1999 = vadd.f32 0.0, %v1998
      %v2000 = vpop.f32.mrb[0].mxu0
      %2001 = vmatprep.mubr.bf16.mxu0 0
      %2002 = vmatmul.mubr.bf16.gmra.mrb[0].mxu0 %v1908
      %v2003 = vpop.f32.mrb[0].mxu0
      %v2004 = vadd.f32 0.0, %v2003
      %v2005 = vpop.f32.mrb[0].mxu0
      %v2006 = vpop.f32.mrb[0].mxu0
      %v2007 = vadd.f32 0.0, %v2006
      %v2008 = vpop.f32.mrb[0].mxu0
      %2009 = vdwg.mxu0
      %v2010 = vadd.f32 %v1808, %v1948
      %v2011 = vadd.f32 %v1809, %v1951
      %v2012 = vadd.f32 %v1810, %v1956
      %v2013 = vadd.f32 %v1811, %v1959
      %v2014 = vadd.f32 %v1812, %v1964
      %v2015 = vadd.f32 %v1813, %v1967
      %v2016 = vadd.f32 %v1814, %v1972
      %v2017 = vadd.f32 %v1815, %v1975
      %v2018 = vadd.f32 %v1816, %v1980
      %v2019 = vadd.f32 %v1817, %v1983
      %v2020 = vadd.f32 %v1818, %v1988
      %v2021 = vadd.f32 %v1819, %v1991
      %v2022 = vadd.f32 %v1820, %v1996
      %v2023 = vadd.f32 %v1821, %v1999
      %v2024 = vadd.f32 %v1822, %v2004
      %v2025 = vadd.f32 %v1823, %v2007
      %v2026 = vld [vmem:[%s1827] sm:$0xf]
      %v2027 = vld [vmem:[%s1827 + $0x4] sm:$0xf]
      %v2028 = vld [vmem:[%s1827 + $0x8] sm:$0x1]
      %v2029 = vld [vmem:[%s1827 + $0xc] sm:$0xf]
      %v2030 = vld [vmem:[%s1827 + $0x10] sm:$0xf]
      %v2031 = vld [vmem:[%s1827 + $0x14] sm:$0x1]
      %v2032 = vld [vmem:[%s1827 + $0x18] sm:$0xf]
      %v2033 = vld [vmem:[%s1827 + $0x1c] sm:$0xf]
      %v2034 = vld [vmem:[%s1827 + $0x20] sm:$0x1]
      %v2035 = vld [vmem:[%s1827 + $0x24] sm:$0xf]
      %v2036 = vld [vmem:[%s1827 + $0x28] sm:$0xf]
      %v2037 = vld [vmem:[%s1827 + $0x2c] sm:$0x1]
      %v2038 = vld [vmem:[%s1827 + $0x30] sm:$0xf]
      %v2039 = vld [vmem:[%s1827 + $0x34] sm:$0xf]
      %v2040 = vld [vmem:[%s1827 + $0x38] sm:$0x1]
      %v2041 = vld [vmem:[%s1827 + $0x3c] sm:$0xf]
      %v2042 = vld [vmem:[%s1827 + $0x40] sm:$0xf]
      %v2043 = vld [vmem:[%s1827 + $0x44] sm:$0x1]
      %v2044 = vld [vmem:[%s1827 + $0x48] sm:$0xf]
      %v2045 = vld [vmem:[%s1827 + $0x4c] sm:$0xf]
      %v2046 = vld [vmem:[%s1827 + $0x50] sm:$0x1]
      %v2047 = vld [vmem:[%s1827 + $0x54] sm:$0xf]
      %v2048 = vld [vmem:[%s1827 + $0x58] sm:$0xf]
      %v2049 = vld [vmem:[%s1827 + $0x5c] sm:$0x1]
      %s2050 = scalar_lea.vmem %s1, 14
      %v2051 = vld [vmem:[%s2050] sm:$0x3]
      %v2053 = vshrl.u32 %v2026, 16
      %v2055 = vrot.slane %v2053, 4
      %v2056 = vshll.u32 %v2026, 16
      %v2058 = vrot.slane %v2056, 5
      %v2059 = vor.u32 %v2055, %v2058
      %v2060 = vrot.slane %v2059, 4
      %v2062 = vshll.u32 %v2027, 16
      %v2064 = vrot.slane %v2062, 5
      %v2065 = vsel %vm230, %v2060, %v2064
      %v2066 = vshrl.u32 %v2027, 16
      %v2068 = vrot.slane %v2066, 4
      %v2069 = vor.u32 %v2068, %v2064
      %v2070 = vrot.slane %v2069, 4
      %v2072 = vshll.u32 %v2028, 16
      %v2074 = vrot.slane %v2072, 5
      %v2075 = vsel %vm230, %v2070, %v2074
      %v2077 = vshrl.u32 %v2029, 16
      %v2079 = vrot.slane %v2077, 4
      %v2080 = vshll.u32 %v2029, 16
      %v2082 = vrot.slane %v2080, 5
      %v2083 = vor.u32 %v2079, %v2082
      %v2084 = vrot.slane %v2083, 4
      %v2086 = vshll.u32 %v2030, 16
      %v2088 = vrot.slane %v2086, 5
      %v2089 = vsel %vm230, %v2084, %v2088
      %v2090 = vshrl.u32 %v2030, 16
      %v2092 = vrot.slane %v2090, 4
      %v2093 = vor.u32 %v2092, %v2088
      %v2094 = vrot.slane %v2093, 4
      %v2096 = vshll.u32 %v2031, 16
      %v2098 = vrot.slane %v2096, 5
      %v2099 = vsel %vm230, %v2094, %v2098
      %v2101 = vshrl.u32 %v2032, 16
      %v2103 = vrot.slane %v2101, 4
      %v2104 = vshll.u32 %v2032, 16
      %v2106 = vrot.slane %v2104, 5
      %v2107 = vor.u32 %v2103, %v2106
      %v2108 = vrot.slane %v2107, 4
      %v2110 = vshll.u32 %v2033, 16
      %v2112 = vrot.slane %v2110, 5
      %v2113 = vsel %vm230, %v2108, %v2112
      %v2114 = vshrl.u32 %v2033, 16
      %v2116 = vrot.slane %v2114, 4
      %v2117 = vor.u32 %v2116, %v2112
      %v2118 = vrot.slane %v2117, 4
      %v2120 = vshll.u32 %v2034, 16
      %v2122 = vrot.slane %v2120, 5
      %v2123 = vsel %vm230, %v2118, %v2122
      %v2125 = vshrl.u32 %v2035, 16
      %v2127 = vrot.slane %v2125, 4
      %v2128 = vshll.u32 %v2035, 16
      %v2130 = vrot.slane %v2128, 5
      %v2131 = vor.u32 %v2127, %v2130
      %v2132 = vrot.slane %v2131, 4
      %v2134 = vshll.u32 %v2036, 16
      %v2136 = vrot.slane %v2134, 5
      %v2137 = vsel %vm230, %v2132, %v2136
      %v2138 = vshrl.u32 %v2036, 16
      %v2140 = vrot.slane %v2138, 4
      %v2141 = vor.u32 %v2140, %v2136
      %v2142 = vrot.slane %v2141, 4
      %v2144 = vshll.u32 %v2037, 16
      %v2146 = vrot.slane %v2144, 5
      %v2147 = vsel %vm230, %v2142, %v2146
      %v2149 = vshrl.u32 %v2038, 16
      %v2151 = vrot.slane %v2149, 4
      %v2152 = vshll.u32 %v2038, 16
      %v2154 = vrot.slane %v2152, 5
      %v2155 = vor.u32 %v2151, %v2154
      %v2156 = vrot.slane %v2155, 4
      %v2158 = vshll.u32 %v2039, 16
      %v2160 = vrot.slane %v2158, 5
      %v2161 = vsel %vm230, %v2156, %v2160
      %v2162 = vshrl.u32 %v2039, 16
      %v2164 = vrot.slane %v2162, 4
      %v2165 = vor.u32 %v2164, %v2160
      %v2166 = vrot.slane %v2165, 4
      %v2168 = vshll.u32 %v2040, 16
      %v2170 = vrot.slane %v2168, 5
      %v2171 = vsel %vm230, %v2166, %v2170
      %v2173 = vshrl.u32 %v2041, 16
      %v2175 = vrot.slane %v2173, 4
      %v2176 = vshll.u32 %v2041, 16
      %v2178 = vrot.slane %v2176, 5
      %v2179 = vor.u32 %v2175, %v2178
      %v2180 = vrot.slane %v2179, 4
      %v2182 = vshll.u32 %v2042, 16
      %v2184 = vrot.slane %v2182, 5
      %v2185 = vsel %vm230, %v2180, %v2184
      %v2186 = vshrl.u32 %v2042, 16
      %v2188 = vrot.slane %v2186, 4
      %v2189 = vor.u32 %v2188, %v2184
      %v2190 = vrot.slane %v2189, 4
      %v2192 = vshll.u32 %v2043, 16
      %v2194 = vrot.slane %v2192, 5
      %v2195 = vsel %vm230, %v2190, %v2194
      %v2197 = vshrl.u32 %v2044, 16
      %v2199 = vrot.slane %v2197, 4
      %v2200 = vshll.u32 %v2044, 16
      %v2202 = vrot.slane %v2200, 5
      %v2203 = vor.u32 %v2199, %v2202
      %v2204 = vrot.slane %v2203, 4
      %v2206 = vshll.u32 %v2045, 16
      %v2208 = vrot.slane %v2206, 5
      %v2209 = vsel %vm230, %v2204, %v2208
      %v2210 = vshrl.u32 %v2045, 16
      %v2212 = vrot.slane %v2210, 4
      %v2213 = vor.u32 %v2212, %v2208
      %v2214 = vrot.slane %v2213, 4
      %v2216 = vshll.u32 %v2046, 16
      %v2218 = vrot.slane %v2216, 5
      %v2219 = vsel %vm230, %v2214, %v2218
      %v2221 = vshrl.u32 %v2047, 16
      %v2223 = vrot.slane %v2221, 4
      %v2224 = vshll.u32 %v2047, 16
      %v2226 = vrot.slane %v2224, 5
      %v2227 = vor.u32 %v2223, %v2226
      %v2228 = vrot.slane %v2227, 4
      %v2230 = vshll.u32 %v2048, 16
      %v2232 = vrot.slane %v2230, 5
      %v2233 = vsel %vm230, %v2228, %v2232
      %v2234 = vshrl.u32 %v2048, 16
      %v2236 = vrot.slane %v2234, 4
      %v2237 = vor.u32 %v2236, %v2232
      %v2238 = vrot.slane %v2237, 4
      %v2240 = vshll.u32 %v2049, 16
      %v2242 = vrot.slane %v2240, 5
      %v2243 = vsel %vm230, %v2238, %v2242
      %v2244 = vunpack.c.l.b16 %v2065
      %v2245 = vunpack.c.l.b16 %v2075
      %v2246 = vunpack.c.l.b16 %v2089
      %v2247 = vunpack.c.l.b16 %v2099
      %v2248 = vunpack.c.l.b16 %v2113
      %v2249 = vunpack.c.l.b16 %v2123
      %v2250 = vunpack.c.l.b16 %v2137
      %v2251 = vunpack.c.l.b16 %v2147
      %v2252 = vunpack.c.l.b16 %v2161
      %v2253 = vunpack.c.l.b16 %v2171
      %v2254 = vunpack.c.l.b16 %v2185
      %v2255 = vunpack.c.l.b16 %v2195
      %v2256 = vunpack.c.l.b16 %v2209
      %v2257 = vunpack.c.l.b16 %v2219
      %v2258 = vunpack.c.l.b16 %v2233
      %v2259 = vunpack.c.l.b16 %v2243
      %v2260 = vpack.c.b16 %v2245, %v2244
      %v2261 = vpack.c.b16 %v2247, %v2246
      %v2262 = vpack.c.b16 %v2249, %v2248
      %v2263 = vpack.c.b16 %v2251, %v2250
      %v2264 = vpack.c.b16 %v2253, %v2252
      %v2265 = vpack.c.b16 %v2255, %v2254
      %v2266 = vpack.c.b16 %v2257, %v2256
      %v2267 = vpack.c.b16 %v2259, %v2258
      %v2269 = vsel %vm447, %v2260, 0
      %v2272 = vsel %vm447, %v2261, 0
      %v2275 = vsel %vm447, %v2262, 0
      %v2278 = vsel %vm447, %v2263, 0
      %v2281 = vsel %vm447, %v2264, 0
      %v2284 = vsel %vm447, %v2265, 0
      %v2287 = vsel %vm447, %v2266, 0
      %v2290 = vsel %vm447, %v2267, 0
      %v2293 = vsel %vm472, %v2051, 0
      %2295 = vmatprep.subr.bf16.mxu0 0
      %2296 = vmatpush1.bf16.msra.mxu0 %v2293
      %2297 = vmatprep.subr.bf16.mxu0 0
      %2298 = vmatpush1.bf16.msra.mxu0 0
      %2299 = vmatprep.subr.bf16.mxu0 0
      %2300 = vmatpush1.bf16.msra.mxu0 0
      %2301 = vmatprep.subr.bf16.mxu0 0
      %2302 = vmatpush1.bf16.msra.mxu0 0
      %2303 = vmatprep.subr.bf16.mxu0 0
      %2304 = vmatpush1.bf16.msra.mxu0 0
      %2305 = vmatprep.subr.bf16.mxu0 0
      %2306 = vmatpush1.bf16.msra.mxu0 0
      %2307 = vmatprep.subr.bf16.mxu0 0
      %2308 = vmatpush1.bf16.msra.mxu0 0
      %2309 = vmatprep.subr.bf16.mxu0 0
      %2310 = vmatpush1.bf16.msra.mxu0 0
      %2311 = vmatprep.subr.bf16.mxu0 0
      %2312 = vmatpush1.bf16.msra.mxu0 0
      %2313 = vmatprep.subr.bf16.mxu0 0
      %2314 = vmatpush1.bf16.msra.mxu0 0
      %2315 = vmatprep.subr.bf16.mxu0 0
      %2316 = vmatpush1.bf16.msra.mxu0 0
      %2317 = vmatprep.subr.bf16.mxu0 0
      %2318 = vmatpush1.bf16.msra.mxu0 0
      %2319 = vmatprep.subr.bf16.mxu0 0
      %2320 = vmatpush1.bf16.msra.mxu0 0
      %2321 = vmatprep.subr.bf16.mxu0 0
      %2322 = vmatpush1.bf16.msra.mxu0 0
      %2323 = vmatprep.subr.bf16.mxu0 0
      %2324 = vmatpush1.bf16.msra.mxu0 0
      %2325 = vmatprep.subr.bf16.mxu0 0
      %2326 = vmatpush1.bf16.msra.mxu0 0
      %2327 = vmatprep.mubr.bf16.mxu0 0
      %2328 = vmatmul.mubr.bf16.gmra.mrb[0].mxu0 %v2269
      %v2329 = vpop.f32.mrb[0].mxu0
      %v2330 = vadd.f32 0.0, %v2329
      %v2331 = vpop.f32.mrb[0].mxu0
      %v2332 = vpop.f32.mrb[0].mxu0
      %v2333 = vadd.f32 0.0, %v2332
      %v2334 = vpop.f32.mrb[0].mxu0
      %2335 = vmatprep.mubr.bf16.mxu0 0
      %2336 = vmatmul.mubr.bf16.gmra.mrb[0].mxu0 %v2272
      %v2337 = vpop.f32.mrb[0].mxu0
      %v2338 = vadd.f32 0.0, %v2337
      %v2339 = vpop.f32.mrb[0].mxu0
      %v2340 = vpop.f32.mrb[0].mxu0
      %v2341 = vadd.f32 0.0, %v2340
      %v2342 = vpop.f32.mrb[0].mxu0
      %2343 = vmatprep.mubr.bf16.mxu0 0
      %2344 = vmatmul.mubr.bf16.gmra.mrb[0].mxu0 %v2275
      %v2345 = vpop.f32.mrb[0].mxu0
      %v2346 = vadd.f32 0.0, %v2345
      %v2347 = vpop.f32.mrb[0].mxu0
      %v2348 = vpop.f32.mrb[0].mxu0
      %v2349 = vadd.f32 0.0, %v2348
      %v2350 = vpop.f32.mrb[0].mxu0
      %2351 = vmatprep.mubr.bf16.mxu0 0
      %2352 = vmatmul.mubr.bf16.gmra.mrb[0].mxu0 %v2278
      %v2353 = vpop.f32.mrb[0].mxu0
      %v2354 = vadd.f32 0.0, %v2353
      %v2355 = vpop.f32.mrb[0].mxu0
      %v2356 = vpop.f32.mrb[0].mxu0
      %v2357 = vadd.f32 0.0, %v2356
      %v2358 = vpop.f32.mrb[0].mxu0
      %2359 = vmatprep.mubr.bf16.mxu0 0
      %2360 = vmatmul.mubr.bf16.gmra.mrb[0].mxu0 %v2281
      %v2361 = vpop.f32.mrb[0].mxu0
      %v2362 = vadd.f32 0.0, %v2361
      %v2363 = vpop.f32.mrb[0].mxu0
      %v2364 = vpop.f32.mrb[0].mxu0
      %v2365 = vadd.f32 0.0, %v2364
      %v2366 = vpop.f32.mrb[0].mxu0
      %2367 = vmatprep.mubr.bf16.mxu0 0
      %2368 = vmatmul.mubr.bf16.gmra.mrb[0].mxu0 %v2284
      %v2369 = vpop.f32.mrb[0].mxu0
      %v2370 = vadd.f32 0.0, %v2369
      %v2371 = vpop.f32.mrb[0].mxu0
      %v2372 = vpop.f32.mrb[0].mxu0
      %v2373 = vadd.f32 0.0, %v2372
      %v2374 = vpop.f32.mrb[0].mxu0
      %2375 = vmatprep.mubr.bf16.mxu0 0
      %2376 = vmatmul.mubr.bf16.gmra.mrb[0].mxu0 %v2287
      %v2377 = vpop.f32.mrb[0].mxu0
      %v2378 = vadd.f32 0.0, %v2377
      %v2379 = vpop.f32.mrb[0].mxu0
      %v2380 = vpop.f32.mrb[0].mxu0
      %v2381 = vadd.f32 0.0, %v2380
      %v2382 = vpop.f32.mrb[0].mxu0
      %2383 = vmatprep.mubr.bf16.mxu0 0
      %2384 = vmatmul.mubr.bf16.gmra.mrb[0].mxu0 %v2290
      %v2385 = vpop.f32.mrb[0].mxu0
      %v2386 = vadd.f32 0.0, %v2385
      %v2387 = vpop.f32.mrb[0].mxu0
      %v2388 = vpop.f32.mrb[0].mxu0
      %v2389 = vadd.f32 0.0, %v2388
      %v2390 = vpop.f32.mrb[0].mxu0
      %2391 = vdwg.mxu0
      %v2392 = vadd.f32 %v2010, %v2330
      %v2393 = vadd.f32 %v2011, %v2333
      %v2394 = vadd.f32 %v2012, %v2338
      %v2395 = vadd.f32 %v2013, %v2341
      %v2396 = vadd.f32 %v2014, %v2346
      %v2397 = vadd.f32 %v2015, %v2349
      %v2398 = vadd.f32 %v2016, %v2354
      %v2399 = vadd.f32 %v2017, %v2357
      %v2400 = vadd.f32 %v2018, %v2362
      %v2401 = vadd.f32 %v2019, %v2365
      %v2402 = vadd.f32 %v2020, %v2370
      %v2403 = vadd.f32 %v2021, %v2373
      %v2404 = vadd.f32 %v2022, %v2378
      %v2405 = vadd.f32 %v2023, %v2381
      %v2406 = vadd.f32 %v2024, %v2386
      %v2407 = vadd.f32 %v2025, %v2389
      %v2408 = vld [vmem:[%s1827] sm:$0xe]
      %v2409 = vld [vmem:[%s1827 + $0xc] sm:$0xe]
      %v2410 = vld [vmem:[%s1827 + $0x18] sm:$0xe]
      %v2411 = vld [vmem:[%s1827 + $0x24] sm:$0xe]
      %v2412 = vld [vmem:[%s1827 + $0x30] sm:$0xe]
      %v2413 = vld [vmem:[%s1827 + $0x3c] sm:$0xe]
      %v2414 = vld [vmem:[%s1827 + $0x48] sm:$0xe]
      %v2415 = vld [vmem:[%s1827 + $0x54] sm:$0xe]
      %s2416 = scalar_lea.vmem %s1, 16
      %v2417 = vld [vmem:[%s2416] sm:$0x3]
      %v2442 = vrot.slane %v2408, 5
      %v2443 = vrot.slane %v2442, 4
      %v2444 = vrot.slane %v2027, 5
      %v2445 = vsel %vm765, %v2443, %v2444
      %v2446 = vrot.slane %v2444, 4
      %v2447 = vrot.slane %v2028, 5
      %v2448 = vsel %vm765, %v2446, %v2447
      %v2449 = vrot.slane %v2409, 5
      %v2450 = vrot.slane %v2449, 4
      %v2451 = vrot.slane %v2030, 5
      %v2452 = vsel %vm765, %v2450, %v2451
      %v2453 = vrot.slane %v2451, 4
      %v2454 = vrot.slane %v2031, 5
      %v2455 = vsel %vm765, %v2453, %v2454
      %v2456 = vrot.slane %v2410, 5
      %v2457 = vrot.slane %v2456, 4
      %v2458 = vrot.slane %v2033, 5
      %v2459 = vsel %vm765, %v2457, %v2458
      %v2460 = vrot.slane %v2458, 4
      %v2461 = vrot.slane %v2034, 5
      %v2462 = vsel %vm765, %v2460, %v2461
      %v2463 = vrot.slane %v2411, 5
      %v2464 = vrot.slane %v2463, 4
      %v2465 = vrot.slane %v2036, 5
      %v2466 = vsel %vm765, %v2464, %v2465
      %v2467 = vrot.slane %v2465, 4
      %v2468 = vrot.slane %v2037, 5
      %v2469 = vsel %vm765, %v2467, %v2468
      %v2470 = vrot.slane %v2412, 5
      %v2471 = vrot.slane %v2470, 4
      %v2472 = vrot.slane %v2039, 5
      %v2473 = vsel %vm765, %v2471, %v2472
      %v2474 = vrot.slane %v2472, 4
      %v2475 = vrot.slane %v2040, 5
      %v2476 = vsel %vm765, %v2474, %v2475
      %v2477 = vrot.slane %v2413, 5
      %v2478 = vrot.slane %v2477, 4
      %v2479 = vrot.slane %v2042, 5
      %v2480 = vsel %vm765, %v2478, %v2479
      %v2481 = vrot.slane %v2479, 4
      %v2482 = vrot.slane %v2043, 5
      %v2483 = vsel %vm765, %v2481, %v2482
      %v2484 = vrot.slane %v2414, 5
      %v2485 = vrot.slane %v2484, 4
      %v2486 = vrot.slane %v2045, 5
      %v2487 = vsel %vm765, %v2485, %v2486
      %v2488 = vrot.slane %v2486, 4
      %v2489 = vrot.slane %v2046, 5
      %v2490 = vsel %vm765, %v2488, %v2489
      %v2491 = vrot.slane %v2415, 5
      %v2492 = vrot.slane %v2491, 4
      %v2493 = vrot.slane %v2048, 5
      %v2494 = vsel %vm765, %v2492, %v2493
      %v2495 = vrot.slane %v2493, 4
      %v2496 = vrot.slane %v2049, 5
      %v2497 = vsel %vm765, %v2495, %v2496
      %v2498 = vunpack.c.l.b16 %v2445
      %v2499 = vunpack.c.l.b16 %v2448
      %v2500 = vunpack.c.l.b16 %v2452
      %v2501 = vunpack.c.l.b16 %v2455
      %v2502 = vunpack.c.l.b16 %v2459
      %v2503 = vunpack.c.l.b16 %v2462
      %v2504 = vunpack.c.l.b16 %v2466
      %v2505 = vunpack.c.l.b16 %v2469
      %v2506 = vunpack.c.l.b16 %v2473
      %v2507 = vunpack.c.l.b16 %v2476
      %v2508 = vunpack.c.l.b16 %v2480
      %v2509 = vunpack.c.l.b16 %v2483
      %v2510 = vunpack.c.l.b16 %v2487
      %v2511 = vunpack.c.l.b16 %v2490
      %v2512 = vunpack.c.l.b16 %v2494
      %v2513 = vunpack.c.l.b16 %v2497
      %v2514 = vpack.c.b16 %v2499, %v2498
      %v2515 = vpack.c.b16 %v2501, %v2500
      %v2516 = vpack.c.b16 %v2503, %v2502
      %v2517 = vpack.c.b16 %v2505, %v2504
      %v2518 = vpack.c.b16 %v2507, %v2506
      %v2519 = vpack.c.b16 %v2509, %v2508
      %v2520 = vpack.c.b16 %v2511, %v2510
      %v2521 = vpack.c.b16 %v2513, %v2512
      %v2523 = vsel %vm447, %v2514, 0
      %v2526 = vsel %vm447, %v2515, 0
      %v2529 = vsel %vm447, %v2516, 0
      %v2532 = vsel %vm447, %v2517, 0
      %v2535 = vsel %vm447, %v2518, 0
      %v2538 = vsel %vm447, %v2519, 0
      %v2541 = vsel %vm447, %v2520, 0
      %v2544 = vsel %vm447, %v2521, 0
      %v2547 = vsel %vm472, %v2417, 0
      %2549 = vmatprep.subr.bf16.mxu0 0
      %2550 = vmatpush1.bf16.msra.mxu0 %v2547
      %2551 = vmatprep.subr.bf16.mxu0 0
      %2552 = vmatpush1.bf16.msra.mxu0 0
      %2553 = vmatprep.subr.bf16.mxu0 0
      %2554 = vmatpush1.bf16.msra.mxu0 0
      %2555 = vmatprep.subr.bf16.mxu0 0
      %2556 = vmatpush1.bf16.msra.mxu0 0
      %2557 = vmatprep.subr.bf16.mxu0 0
      %2558 = vmatpush1.bf16.msra.mxu0 0
      %2559 = vmatprep.subr.bf16.mxu0 0
      %2560 = vmatpush1.bf16.msra.mxu0 0
      %2561 = vmatprep.subr.bf16.mxu0 0
      %2562 = vmatpush1.bf16.msra.mxu0 0
      %2563 = vmatprep.subr.bf16.mxu0 0
      %2564 = vmatpush1.bf16.msra.mxu0 0
      %2565 = vmatprep.subr.bf16.mxu0 0
      %2566 = vmatpush1.bf16.msra.mxu0 0
      %2567 = vmatprep.subr.bf16.mxu0 0
      %2568 = vmatpush1.bf16.msra.mxu0 0
      %2569 = vmatprep.subr.bf16.mxu0 0
      %2570 = vmatpush1.bf16.msra.mxu0 0
      %2571 = vmatprep.subr.bf16.mxu0 0
      %2572 = vmatpush1.bf16.msra.mxu0 0
      %2573 = vmatprep.subr.bf16.mxu0 0
      %2574 = vmatpush1.bf16.msra.mxu0 0
      %2575 = vmatprep.subr.bf16.mxu0 0
      %2576 = vmatpush1.bf16.msra.mxu0 0
      %2577 = vmatprep.subr.bf16.mxu0 0
      %2578 = vmatpush1.bf16.msra.mxu0 0
      %2579 = vmatprep.subr.bf16.mxu0 0
      %2580 = vmatpush1.bf16.msra.mxu0 0
      %2581 = vmatprep.mubr.bf16.mxu0 0
      %2582 = vmatmul.mubr.bf16.gmra.mrb[0].mxu0 %v2523
      %v2583 = vpop.f32.mrb[0].mxu0
      %v2584 = vadd.f32 0.0, %v2583
      %v2585 = vpop.f32.mrb[0].mxu0
      %v2586 = vpop.f32.mrb[0].mxu0
      %v2587 = vadd.f32 0.0, %v2586
      %v2588 = vpop.f32.mrb[0].mxu0
      %2589 = vmatprep.mubr.bf16.mxu0 0
      %2590 = vmatmul.mubr.bf16.gmra.mrb[0].mxu0 %v2526
      %v2591 = vpop.f32.mrb[0].mxu0
      %v2592 = vadd.f32 0.0, %v2591
      %v2593 = vpop.f32.mrb[0].mxu0
      %v2594 = vpop.f32.mrb[0].mxu0
      %v2595 = vadd.f32 0.0, %v2594
      %v2596 = vpop.f32.mrb[0].mxu0
      %2597 = vmatprep.mubr.bf16.mxu0 0
      %2598 = vmatmul.mubr.bf16.gmra.mrb[0].mxu0 %v2529
      %v2599 = vpop.f32.mrb[0].mxu0
      %v2600 = vadd.f32 0.0, %v2599
      %v2601 = vpop.f32.mrb[0].mxu0
      %v2602 = vpop.f32.mrb[0].mxu0
      %v2603 = vadd.f32 0.0, %v2602
      %v2604 = vpop.f32.mrb[0].mxu0
      %2605 = vmatprep.mubr.bf16.mxu0 0
      %2606 = vmatmul.mubr.bf16.gmra.mrb[0].mxu0 %v2532
      %v2607 = vpop.f32.mrb[0].mxu0
      %v2608 = vadd.f32 0.0, %v2607
      %v2609 = vpop.f32.mrb[0].mxu0
      %v2610 = vpop.f32.mrb[0].mxu0
      %v2611 = vadd.f32 0.0, %v2610
      %v2612 = vpop.f32.mrb[0].mxu0
      %2613 = vmatprep.mubr.bf16.mxu0 0
      %2614 = vmatmul.mubr.bf16.gmra.mrb[0].mxu0 %v2535
      %v2615 = vpop.f32.mrb[0].mxu0
      %v2616 = vadd.f32 0.0, %v2615
      %v2617 = vpop.f32.mrb[0].mxu0
      %v2618 = vpop.f32.mrb[0].mxu0
      %v2619 = vadd.f32 0.0, %v2618
      %v2620 = vpop.f32.mrb[0].mxu0
      %2621 = vmatprep.mubr.bf16.mxu0 0
      %2622 = vmatmul.mubr.bf16.gmra.mrb[0].mxu0 %v2538
      %v2623 = vpop.f32.mrb[0].mxu0
      %v2624 = vadd.f32 0.0, %v2623
      %v2625 = vpop.f32.mrb[0].mxu0
      %v2626 = vpop.f32.mrb[0].mxu0
      %v2627 = vadd.f32 0.0, %v2626
      %v2628 = vpop.f32.mrb[0].mxu0
      %2629 = vmatprep.mubr.bf16.mxu0 0
      %2630 = vmatmul.mubr.bf16.gmra.mrb[0].mxu0 %v2541
      %v2631 = vpop.f32.mrb[0].mxu0
      %v2632 = vadd.f32 0.0, %v2631
      %v2633 = vpop.f32.mrb[0].mxu0
      %v2634 = vpop.f32.mrb[0].mxu0
      %v2635 = vadd.f32 0.0, %v2634
      %v2636 = vpop.f32.mrb[0].mxu0
      %2637 = vmatprep.mubr.bf16.mxu0 0
      %2638 = vmatmul.mubr.bf16.gmra.mrb[0].mxu0 %v2544
      %v2639 = vpop.f32.mrb[0].mxu0
      %v2640 = vadd.f32 0.0, %v2639
      %v2641 = vpop.f32.mrb[0].mxu0
      %v2642 = vpop.f32.mrb[0].mxu0
      %v2643 = vadd.f32 0.0, %v2642
      %v2644 = vpop.f32.mrb[0].mxu0
      %2645 = vdwg.mxu0
      %v2646 = vadd.f32 %v2392, %v2584
      %v2647 = vadd.f32 %v2393, %v2587
      %v2648 = vadd.f32 %v2394, %v2592
      %v2649 = vadd.f32 %v2395, %v2595
      %v2650 = vadd.f32 %v2396, %v2600
      %v2651 = vadd.f32 %v2397, %v2603
      %v2652 = vadd.f32 %v2398, %v2608
      %v2653 = vadd.f32 %v2399, %v2611
      %v2654 = vadd.f32 %v2400, %v2616
      %v2655 = vadd.f32 %v2401, %v2619
      %v2656 = vadd.f32 %v2402, %v2624
      %v2657 = vadd.f32 %v2403, %v2627
      %v2658 = vadd.f32 %v2404, %v2632
      %v2659 = vadd.f32 %v2405, %v2635
      %v2660 = vadd.f32 %v2406, %v2640
      %v2661 = vadd.f32 %v2407, %v2643
      %v2662 = vld [vmem:[%s2] sm:$0x1]
      %v2664 = vlaneseq
      %v2665 = vshrl.u32 %v2664, 7
      %v2666 = vsub.s32 0, %v2665
      %v2667 = vrot.slane %v2662, %v2666
      %v2669 = vadd.f32 %v2646, %v2667
      %v2670 = vadd.f32 %v2647, %v2667
      %v2671 = vadd.f32 %v2648, %v2667
      %v2672 = vadd.f32 %v2649, %v2667
      %v2673 = vadd.f32 %v2650, %v2667
      %v2674 = vadd.f32 %v2651, %v2667
      %v2675 = vadd.f32 %v2652, %v2667
      %v2676 = vadd.f32 %v2653, %v2667
      %v2677 = vadd.f32 %v2654, %v2667
      %v2678 = vadd.f32 %v2655, %v2667
      %v2679 = vadd.f32 %v2656, %v2667
      %v2680 = vadd.f32 %v2657, %v2667
      %v2681 = vadd.f32 %v2658, %v2667
      %v2682 = vadd.f32 %v2659, %v2667
      %v2683 = vadd.f32 %v2660, %v2667
      %v2684 = vadd.f32 %v2661, %v2667
      %v2685 = vmax.f32 %v2669, 0.0
      %v2686 = vmax.f32 %v2670, 0.0
      %v2687 = vmax.f32 %v2671, 0.0
      %v2688 = vmax.f32 %v2672, 0.0
      %v2689 = vmax.f32 %v2673, 0.0
      %v2690 = vmax.f32 %v2674, 0.0
      %v2691 = vmax.f32 %v2675, 0.0
      %v2692 = vmax.f32 %v2676, 0.0
      %v2693 = vmax.f32 %v2677, 0.0
      %v2694 = vmax.f32 %v2678, 0.0
      %v2695 = vmax.f32 %v2679, 0.0
      %v2696 = vmax.f32 %v2680, 0.0
      %v2697 = vmax.f32 %v2681, 0.0
      %v2698 = vmax.f32 %v2682, 0.0
      %v2699 = vmax.f32 %v2683, 0.0
      %v2700 = vmax.f32 %v2684, 0.0
      %vm2701 = vcmask 64512
      %2702 = vst.msk [vmem:[%s194] sm:$0xff] %vm2701, %v2685
      %2703 = vst.msk [vmem:[%s194 + $0x8] sm:$0xff] %vm2701, %v2686
      %2704 = vst.msk [vmem:[%s194 + $0x10] sm:$0xff] %vm2701, %v2687
      %2705 = vst.msk [vmem:[%s194 + $0x18] sm:$0xff] %vm2701, %v2688
      %2706 = vst.msk [vmem:[%s194 + $0x20] sm:$0xff] %vm2701, %v2689
      %2707 = vst.msk [vmem:[%s194 + $0x28] sm:$0xff] %vm2701, %v2690
      %2708 = vst.msk [vmem:[%s194 + $0x30] sm:$0xff] %vm2701, %v2691
      %2709 = vst.msk [vmem:[%s194 + $0x38] sm:$0xff] %vm2701, %v2692
      %2710 = vst.msk [vmem:[%s194 + $0x40] sm:$0xff] %vm2701, %v2693
      %2711 = vst.msk [vmem:[%s194 + $0x48] sm:$0xff] %vm2701, %v2694
      %2712 = vst.msk [vmem:[%s194 + $0x50] sm:$0xff] %vm2701, %v2695
      %2713 = vst.msk [vmem:[%s194 + $0x58] sm:$0xff] %vm2701, %v2696
      %2714 = vst.msk [vmem:[%s194 + $0x60] sm:$0xff] %vm2701, %v2697
      %2715 = vst.msk [vmem:[%s194 + $0x68] sm:$0xff] %vm2701, %v2698
      %2716 = vst.msk [vmem:[%s194 + $0x70] sm:$0xff] %vm2701, %v2699
      %2717 = vst.msk [vmem:[%s194 + $0x78] sm:$0xff] %vm2701, %v2700
      %s2718 = smul.u32 8, %s19
      %p2719 = scmp.lt.s32.totalorder %s18, 1
      %s2720 = scalar_select %p2719, %s18, 1
      %p2721 = scmp.lt.s32.totalorder %s2718, 15
      %s2722 = scalar_select %p2721, %s2718, 15
      %s2723 = smul.addr %s2722, 2
      %s2724 = smul.addr %s2720, 32
      %s2725 = sadd.s32 %s2723, %s2724
      %s2726 = smul.addr %s2725, 8
      %s2727 = scalar_lea.vmem %s3, %s2726
      // Predicated region
      $region33: #{tpu_custom_call.1} parent=31 // pred_check
        %p2728 = pneg %p114
      $region34: #{tpu_custom_call.1} parent=31 // pred_check_branch
        %2730 = sbr.rel (%p2728) target = $region36
      $region35: #{tpu_custom_call.1} parent=31 // pred_region
        %s2731 = smul.u32 8, %s19
      $region36: #{tpu_custom_call.1} parent=31 // pred_fallthru
        _
    $region32: #{tpu_custom_call.1} parent=5 // pred_fallthru
      _
    %p2732 = scmp.le.s32.totalorder 2, %s9
    // Predicated region
    $region37: #{tpu_custom_call.1} parent=5 // pred_check
      %p2733 = pneg %p2732
    $region38: #{tpu_custom_call.1} parent=5 // pred_check_branch
      %2735 = sbr.rel (%p2733) target = $region40
    $region39: #{tpu_custom_call.1} parent=5 // pred_region
      %s2736 = ssub.s32 %s9, 2
      // Predicated region
      $region41: #{tpu_custom_call.1} parent=39 // pred_check
        %p2737 = pneg %p120
      $region42: #{tpu_custom_call.1} parent=39 // pred_check_branch
        %2739 = sbr.rel (%p2737) target = $region44
      $region43: #{tpu_custom_call.1} parent=39 // pred_region
        %s2740 = smul.u32 8, %s21
        %p2741 = scmp.lt.s32.totalorder %s20, 1
        %s2742 = scalar_select %p2741, %s20, 1
        %p2743 = scmp.lt.s32.totalorder %s2740, 15
        %s2744 = scalar_select %p2743, %s2740, 15
        %s2745 = smul.addr %s2744, 2
        %s2746 = smul.addr %s2742, 32
        %s2747 = sadd.s32 %s2745, %s2746
        %s2748 = smul.addr %s2747, 8
        %s2749 = scalar_lea.vmem %s3, %s2748
      $region44: #{tpu_custom_call.1} parent=39 // pred_fallthru
        _
    $region40: #{tpu_custom_call.1} parent=5 // pred_fallthru
      _
  $region6: #{tpu_custom_call.1} parent=0 // loop_footer
    %s13 = sadd.s32 1, %s9
  $region7: #{tpu_custom_call.1} parent=0 // loop_footer_branch
    %8 = sbr.rel target = $region3
  $region8: #{tpu_custom_call.1} parent=0 // loop_exit
    _

</llo_original>
